<compile_context>
chip_gen: v6e
topology: v6e:2x2x1
jax: 0.10.0
libtpu: 0.0.40
codegen_flags: <defaults>
</compile_context>

<pallas_src>
import functools
import math
from typing import NamedTuple

import jax
import jax.numpy as jnp
from jax.experimental import pallas as pl
from jax.experimental.pallas import tpu as pltpu

GRID_SIZE = 5
SPLINE_ORDER = 3
GRID_RANGE = (-1.0, 1.0)

LANE = 128
SUBLANE = 8


def _round_up(x, m):
    return ((x + m - 1) // m) * m


@functools.lru_cache(maxsize=1)
def _tile_config():
    """Per-generation tile caps / VMEM budget (roofline-driven)."""
    kind = ""
    try:
        kind = jax.devices()[0].device_kind.lower()
    except Exception:
        pass
    if "v5" in kind:      # 197 TF/s vs 0.82 TB/s, 128-wide MXU N, 128 MiB VMEM
        return {"tb_cap": 384, "to_cap": 128, "tf_cap": 256,
                "vmem_cap": 96 << 20, "num_cores": 1}
    if "v6" in kind:      # 918 TF/s vs 1.4 TB/s -> large batch tile, 128 MiB VMEM
        return {"tb_cap": 768, "to_cap": 256, "tf_cap": 256,
                "vmem_cap": 100 << 20, "num_cores": 1}
    if "v7" in kind:      # 64 MiB VMEM/TC, 3.2 TB/s HBM, 2 TensorCores
        return {"tb_cap": 384, "to_cap": 256, "tf_cap": 256,
                "vmem_cap": 48 << 20, "num_cores": 2}
    return {"tb_cap": 512, "to_cap": 256, "tf_cap": 256,
            "vmem_cap": 64 << 20, "num_cores": 1}


# --------------------------------------------------------------------------
# Kernel
# --------------------------------------------------------------------------
def kan_linear_kernel(x_ref, grid_ref, invd_ref, w_ref, out_ref, slab_ref, *,
                      tile_f, n_knots, spline_order, n_o):
    """Grid = (batch tiles, out tiles, feature tiles); f is the reduction axis.

    x_ref    : (TB, TF)             f32 activations of this feature tile
    grid_ref : (n_knots, TF)        f32 knot table (per feature column)
    invd_ref : (n_den, TF)          f32 precomputed 1/(t[j+k]-t[j])
    w_ref    : ((C+1)*TF, TO)       stacked [base | spline_0..C-1] weights
    out_ref  : (TB, TO)             f32 output tile (resident across f; direct accumulation)
    slab_ref : (n_f*TB, (C+1)*TF)   VMEM slab cache, persists across grid steps
    """
    o_idx = pl.program_id(1)
    f_idx = pl.program_id(2)
    tf = tile_f
    tb = x_ref.shape[0]
    cdt = w_ref.dtype                       # MXU input dtype (bf16 by default)
    row0 = pl.multiple_of(f_idx * tb, tb)   # slab-cache row offset for this f tile

    @pl.when(f_idx == 0)
    def _init():
        out_ref[...] = jnp.zeros_like(out_ref)

    @pl.when(o_idx == 0)
    def _build_slab_and_matmul():
        x = x_ref[...]                                        # (TB, TF) f32

        # --- base path: SiLU (denominator reciprocal on the EUP) ------------
        silu = (x * pl.reciprocal(1.0 + jnp.exp(-x), approx=True)).astype(cdt)
        if n_o > 1:
            slab_ref[pl.ds(row0, tb), 0:tf] = silu
        out_ref[...] += jnp.dot(silu, w_ref[0:tf, :],
                                preferred_element_type=jnp.float32)

        # --- Cox-de Boor recursion (unrolled; divides precomputed host-side) -
        kn = [grid_ref[j:j + 1, :] for j in range(n_knots)]   # (1, TF) rows

        # Degree-0 bases from one >= list: ge_j - ge_{j+1} == 1_{[t_j, t_{j+1})}.
        ge = [(x >= kn[j]).astype(jnp.float32) for j in range(n_knots)]
        bases = [ge[j] - ge[j + 1] for j in range(n_knots - 1)]

        off = 0
        for k in range(1, spline_order + 1):
            n_cur = len(bases)                                # n_knots - k
            # a_j = (x - t_j)/(t_{j+k} - t_j) * B_{j,k-1}; shared between the
            # two neighbouring degree-k bases.
            alphas = [
                (x - kn[j]) * invd_ref[off + j:off + j + 1, :] * bases[j]
                for j in range(n_cur)
            ]
            if k < spline_order:
                bases = [alphas[j] - alphas[j + 1] + bases[j + 1]
                         for j in range(n_cur - 1)]
            else:
                # Final degree: stream every basis straight into its own MXU
                # chunk (and into the slab cache for reuse on o > 0 steps), so
                # vmatmul overlaps the remaining VALU recursion work.
                for c in range(n_cur - 1):                    # == grid_size + spline_order
                    bc = (alphas[c] - alphas[c + 1] + bases[c + 1]).astype(cdt)
                    if n_o > 1:
                        slab_ref[pl.ds(row0, tb), (1 + c) * tf:(2 + c) * tf] = bc
                    out_ref[...] += jnp.dot(
                        bc, w_ref[(1 + c) * tf:(2 + c) * tf, :],
                        preferred_element_type=jnp.float32)
            off += n_knots - k

    if n_o > 1:
        @pl.when(o_idx > 0)
        def _reuse_cached_slab():
            out_ref[...] += jnp.dot(slab_ref[pl.ds(row0, tb), :], w_ref[...],
                                    preferred_element_type=jnp.float32)


# --------------------------------------------------------------------------
# Host-side packing (padding, reciprocal denominators, stacked weights)
# --------------------------------------------------------------------------
class PackedKANLayer(NamedTuple):
    grid_p: jax.Array       # (n_knots, F_pad) f32 knots
    invd_p: jax.Array       # (n_den,  F_pad) f32 reciprocal denominators
    w_p: jax.Array          # (n_ftiles*(C+1)*TF, O_pad) stacked weights
    in_features: int
    out_features: int
    f_pad: int
    o_pad: int
    tile_f: int
    tile_o: int
    grid_size: int
    spline_order: int


def pack_kan_layer(grid_t, base_w_t, spline_w_t, *, grid_size=GRID_SIZE,
                   spline_order=SPLINE_ORDER, weight_dtype=jnp.bfloat16):
    """Pads + reorders one KANLinear's parameters for the fused kernel.

    grid_t      : (n_knots, F)   knot table (transposed efficient_kan grid)
    base_w_t    : (F, O)         base_weight.T
    spline_w_t  : (C, F, O)      scaled_spline_weight permuted (coeff, in, out)

    weight_dtype: bf16 streams weights/slab through the bf16 MXU path with f32
                  accumulation; pass jnp.float32 for a full-precision path on
                  deeper stacks.
    """
    cfg = _tile_config()
    n_knots, in_f = grid_t.shape
    n_coeff, _, out_f = spline_w_t.shape
    assert n_coeff == grid_size + spline_order

    # Pad features / outputs up to a multiple of the tile itself so tiles stay
    # large and uniform (padded rows/cols carry zero weights, so they're free).
    tile_f = min(cfg["tf_cap"], _round_up(in_f, LANE))
    f_pad = _round_up(in_f, tile_f)
    tile_o = min(cfg["to_cap"], _round_up(out_f, LANE))
    o_pad = _round_up(out_f, tile_o)
    n_ft = f_pad // tile_f

    # Pad the knot table by replicating the last real feature column so padded
    # columns keep strictly increasing knots (their weights are zero anyway).
    grid_p = jnp.pad(grid_t.astype(jnp.float32),
                     ((0, 0), (0, f_pad - in_f)), mode="edge")

    # Reciprocal denominators 1/(t[j+k]-t[j]) for k = 1..K, same ordering the
    # kernel walks with a static offset.  Coincident knots (possible after an
    # adaptive grid_update) are clamped away from zero instead of producing inf.
    rows = []
    for k in range(1, spline_order + 1):
        d = grid_p[k:, :] - grid_p[:-k, :]
        d = jnp.where(jnp.abs(d) < 1e-8, jnp.where(d < 0, -1e-8, 1e-8), d)
        rows.append(1.0 / d)
    invd_p = jnp.concatenate(rows, axis=0).astype(jnp.float32)

    base_p = jnp.pad(base_w_t.astype(jnp.float32),
                     ((0, f_pad - in_f), (0, o_pad - out_f)))
    spline_p = jnp.pad(spline_w_t.astype(jnp.float32),
                       ((0, 0), (0, f_pad - in_f), (0, o_pad - out_f)))
    stacked = jnp.concatenate([base_p[None], spline_p], axis=0)  # (C+1, Fp, Op)

    # Re-order rows so every feature tile's (C+1)*TF weight rows are contiguous
    # and match the in-kernel slab layout [silu | B_0 | .. | B_{C-1}].
    w_p = (stacked.reshape(n_coeff + 1, n_ft, tile_f, o_pad)
                  .transpose(1, 0, 2, 3)
                  .reshape(n_ft * (n_coeff + 1) * tile_f, o_pad)
                  .astype(weight_dtype))

    return PackedKANLayer(grid_p, invd_p, w_p, in_f, out_f, f_pad, o_pad,
                          tile_f, tile_o, grid_size, spline_order)


# --------------------------------------------------------------------------
# Forward wrappers
# --------------------------------------------------------------------------
def kan_linear_forward(x, layer: PackedKANLayer):
    assert x.ndim == 2 and x.shape[1] == layer.in_features
    cfg = _tile_config()
    batch = x.shape[0]
    n_knots = layer.grid_p.shape[0]
    n_den = layer.invd_p.shape[0]
    n_coeff = layer.grid_size + layer.spline_order
    tf, f_pad = layer.tile_f, layer.f_pad
    to, o_pad = layer.tile_o, layer.o_pad
    slab_w = (n_coeff + 1) * tf

    # Batch tile (per-generation roofline cap).
    tb = min(cfg["tb_cap"], _round_up(batch, SUBLANE))
    # v7x has 2 TensorCores and only the batch axis is "parallel" (the o axis
    # must stay "arbitrary" because of the per-core slab cache), so split the
    # batch into >= 2 tiles whenever it is large enough.
    if cfg["num_cores"] > 1 and batch > SUBLANE and _round_up(batch, tb) // tb < 2:
        tb = _round_up((batch + 1) // 2, SUBLANE)
    b_pad = _round_up(batch, tb)

    x_p = jnp.pad(x.astype(jnp.float32),
                  ((0, b_pad - batch), (0, f_pad - layer.in_features)))

    n_b, n_o, n_f = b_pad // tb, o_pad // to, f_pad // tf
    grid = (n_b, n_o, n_f)
    compute_dtype = layer.w_p.dtype
    w_isz = jnp.dtype(compute_dtype).itemsize

    kernel = functools.partial(kan_linear_kernel, tile_f=tf, n_knots=n_knots,
                               spline_order=layer.spline_order, n_o=n_o)

    # VMEM budget derived from the actual tile sizes (2x double buffering,
    # 2x headroom for Cox-de Boor temporaries Mosaic may spill to VMEM).
    per_step_blocks = (tb * tf * 4 + (n_knots + n_den) * tf * 4
                       + slab_w * to * w_isz + tb * to * 4)
    slab_cache = n_f * tb * slab_w * w_isz
    vmem_limit = int(min(cfg["vmem_cap"],
                         max(32 << 20,
                             2 * (2 * per_step_blocks + slab_cache) + (16 << 20))))

    flops = (2 * b_pad * (n_coeff + 1) * f_pad * o_pad      # fused MXU chunks
             + 120 * b_pad * f_pad)                         # basis recursion (once per (b, f))
    transcendentals = b_pad * f_pad                         # exp in SiLU
    bytes_accessed = (4 * b_pad * f_pad * n_o               # x block re-streamed per O tile
                      + layer.w_p.nbytes * n_b              # weights per batch tile
                      + (layer.grid_p.nbytes + layer.invd_p.nbytes) * n_b * n_o
                      + 4 * b_pad * o_pad)                  # output writeback

    out = pl.pallas_call(
        kernel,
        out_shape=jax.ShapeDtypeStruct((b_pad, o_pad), jnp.float32),
        grid_spec=pltpu.PrefetchScalarGridSpec(
            num_scalar_prefetch=0,
            grid=grid,
            in_specs=[
                pl.BlockSpec((tb, tf), lambda b, o, f: (b, f)),
                pl.BlockSpec((n_knots, tf), lambda b, o, f: (0, f)),
                pl.BlockSpec((n_den, tf), lambda b, o, f: (0, f)),
                # TODO(synk): optionally pipeline_mode=pl.Buffered(3) here to
                # deepen weight prefetch under the long o==0 slab-build steps.
                pl.BlockSpec((slab_w, to), lambda b, o, f: (f, o)),
            ],
            out_specs=pl.BlockSpec((tb, to), lambda b, o, f: (b, o)),
            scratch_shapes=[
                pltpu.VMEM((n_f * tb, slab_w), compute_dtype),   # slab cache
            ],
        ),
        compiler_params=pltpu.CompilerParams(
            # o stays "arbitrary": the slab cache lives in per-core scratch and
            # is filled on the o == 0 pass, so the o axis must not be split
            # across TensorCores.  f is the reduction axis.
            dimension_semantics=("parallel", "arbitrary", "arbitrary"),
            vmem_limit_bytes=vmem_limit,
        ),
        cost_estimate=pl.CostEstimate(
            flops=int(flops),
            transcendentals=int(transcendentals),
            bytes_accessed=int(bytes_accessed)),
    )(x_p, layer.grid_p, layer.invd_p, layer.w_p)

    return out[:batch, :layer.out_features]


def kan_forward(x, packed_layers):
    for layer in packed_layers:
        x = kan_linear_forward(x, layer)
    return x


# --------------------------------------------------------------------------
# Parameter init (logical, efficient_kan shapes)
# --------------------------------------------------------------------------
def init_kan_params(key, layers_hidden, *, grid_size=GRID_SIZE,
                    spline_order=SPLINE_ORDER, grid_range=GRID_RANGE):
    """Deterministic synthetic parameter init (shapes match KANLinear)."""
    # TODO(synk): reset_parameters' curve2coeff (torch.linalg.lstsq) init is not
    # replicated; a deterministic uniform init with the same shapes is used.
    params = []
    h = (grid_range[1] - grid_range[0]) / grid_size
    knots_1d = (jnp.arange(-spline_order, grid_size + spline_order + 1,
                           dtype=jnp.float32) * h + grid_range[0])
    for in_f, out_f in zip(layers_hidden, layers_hidden[1:]):
        key, k1, k2, k3 = jax.random.split(key, 4)
        grid_t = jnp.broadcast_to(knots_1d[:, None],
                                  (knots_1d.shape[0], in_f)).astype(jnp.float32)
        bound = 1.0 / math.sqrt(in_f)
        base_weight = jax.random.uniform(k1, (out_f, in_f), jnp.float32,
                                         -bound, bound)
        spline_weight = jax.random.uniform(
            k2, (out_f, in_f, grid_size + spline_order), jnp.float32, -0.1, 0.1)
        spline_scaler = jax.random.uniform(k3, (out_f, in_f), jnp.float32,
                                           -bound, bound)
        scaled = spline_weight * spline_scaler[..., None]        # (O, F, C)
        base_w_t = jnp.transpose(base_weight)                    # (F, O)
        spline_w_t = jnp.transpose(scaled, (2, 1, 0))            # (C, F, O)
        params.append((grid_t, base_w_t, spline_w_t))
    return params


# -------------------- plain-JAX reference (for validation) ------------------
def kan_linear_ref(x, grid_t, base_w_t, spline_w_t, *,
                   grid_size=GRID_SIZE, spline_order=SPLINE_ORDER):
    grid = grid_t.T                                   # (F, Gt) as in torch
    base = jax.nn.silu(x) @ base_w_t
    xe = x[:, :, None]
    g = grid[None, :, :]
    bases = ((xe >= g[:, :, :-1]) & (xe < g[:, :, 1:])).astype(x.dtype)
    for k in range(1, spline_order + 1):
        bases = ((xe - g[:, :, :-(k + 1)])
                 / (g[:, :, k:-1] - g[:, :, :-(k + 1)]) * bases[:, :, :-1]
                 + (g[:, :, k + 1:] - xe)
                 / (g[:, :, k + 1:] - g[:, :, 1:-k]) * bases[:, :, 1:])
    spline = jnp.einsum('bfc,cfo->bo', bases, spline_w_t)
    return base + spline


def kan_ref(x, params):
    for grid_t, base_w_t, spline_w_t in params:
        x = kan_linear_ref(x, grid_t, base_w_t, spline_w_t)
    return x


def _run_case(key, layers_hidden, batch, name):
    key, kx, kp = jax.random.split(key, 3)
    x = jax.random.uniform(kx, (batch, layers_hidden[0]), jnp.float32,
                           -1.0, 1.0)
    params = init_kan_params(kp, layers_hidden)
    packed = [pack_kan_layer(g, bw, sw) for (g, bw, sw) in params]

    out = jax.block_until_ready(kan_forward(x, packed))
    ref = kan_ref(x, params)
    assert out.shape == (batch, layers_hidden[-1])
    max_err = float(jnp.max(jnp.abs(out - ref)))
    # bf16 matmul inputs (MXU path, f32 accumulation) vs a pure-f32 reference.
    assert jnp.allclose(out, ref, atol=5e-2, rtol=5e-2), \
        f"{name}: mismatch vs reference (max abs err {max_err})"
    return key


if __name__ == "__main__":
    key = jax.random.PRNGKey(0)
    # Small case (single tile per axis).
    key = _run_case(key, [16, 32, 8], batch=8, name="small")
    # Multi-tile case: exercises the slab cache (n_o > 1), multi-feature-tile
    # reduction (n_f > 1) and direct out_ref accumulation across f.
    key = _run_case(key, [300, 280, 40], batch=24, name="multitile")
    print("KERNEL_OK")
</pallas_src>

<mosaic_0001>
module attributes {stable_mosaic.version = 11 : i64} {
  func.func @kan_linear_kernel(%arg0: i32, %arg1: i32, %arg2: i32, %arg3: memref<8x128xf32, #tpu.memory_space<vmem>>, %arg4: memref<12x128xf32, #tpu.memory_space<vmem>>, %arg5: memref<30x128xf32, #tpu.memory_space<vmem>>, %arg6: memref<1152x128xbf16, #tpu.memory_space<vmem>>, %arg7: memref<8x128xf32, #tpu.memory_space<vmem>>, %arg8: memref<8x1152xbf16, #tpu.memory_space<vmem>>) attributes {dimension_semantics = [#tpu.dimension_semantics<parallel>, #tpu.dimension_semantics<arbitrary>, #tpu.dimension_semantics<arbitrary>], iteration_bounds = array<i64: 1, 1, 1>, scalar_prefetch = 0 : i64, scratch_operands = 1 : i64, tpu.core_type = #tpu.core_type<tc>, window_params = [{transform_indices = @transform_0, window_bounds = array<i64: 8, 128>}, {transform_indices = @transform_1, window_bounds = array<i64: 12, 128>}, {transform_indices = @transform_2, window_bounds = array<i64: 30, 128>}, {transform_indices = @transform_3, window_bounds = array<i64: 1152, 128>}, {transform_indices = @transform_4, window_bounds = array<i64: 8, 128>}]} {
    %c0_i32 = arith.constant 0 : i32
    %0 = arith.cmpi eq, %arg2, %c0_i32 : i32
    %1 = arith.extui %0 : i1 to i32
    %c0_i32_0 = arith.constant 0 : i32
    %2 = arith.cmpi ne, %1, %c0_i32_0 : i32
    scf.if %2 {
      %cst = arith.constant 0.000000e+00 : f32
      %6 = vector.broadcast %cst : f32 to vector<8x128xf32>
      %c0 = arith.constant 0 : index
      %c0_3 = arith.constant 0 : index
      %7 = vector.load %arg7[%c0, %c0_3] : memref<8x128xf32, #tpu.memory_space<vmem>>, vector<8x128xf32>
      tpu.vector_store %arg7[%c0, %c0_3], %6 {strides = array<i32>} : memref<8x128xf32, #tpu.memory_space<vmem>>, vector<8x128xf32>,
    } else {
    }
    %c0_i32_1 = arith.constant 0 : i32
    %3 = arith.cmpi eq, %arg1, %c0_i32_1 : i32
    %4 = arith.extui %3 : i1 to i32
    %c0_i32_2 = arith.constant 0 : i32
    %5 = arith.cmpi ne, %4, %c0_i32_2 : i32
    scf.if %5 {
      %c0 = arith.constant 0 : index
      %c0_3 = arith.constant 0 : index
      %6 = vector.load %arg3[%c0, %c0_3] : memref<8x128xf32, #tpu.memory_space<vmem>>, vector<8x128xf32>
      %cst = arith.constant 0.000000e+00 : f32
      %7 = vector.broadcast %cst : f32 to vector<8x128xf32>
      %8 = arith.subf %7, %6 : vector<8x128xf32>
      %9 = math.exp %8 : vector<8x128xf32>
      %cst_4 = arith.constant 1.000000e+00 : f32
      %10 = vector.broadcast %cst_4 : f32 to vector<8x128xf32>
      %11 = arith.addf %10, %9 : vector<8x128xf32>
      %12 = tpu.reciprocal %11 {approx = true} : vector<8x128xf32> -> vector<8x128xf32>
      %13 = arith.mulf %6, %12 : vector<8x128xf32>
      %14 = arith.truncf %13 : vector<8x128xf32> to vector<8x128xbf16>
      %c0_5 = arith.constant 0 : index
      %c0_6 = arith.constant 0 : index
      %15 = vector.load %arg7[%c0_5, %c0_6] : memref<8x128xf32, #tpu.memory_space<vmem>>, vector<8x128xf32>
      %c0_7 = arith.constant 0 : index
      %c0_8 = arith.constant 0 : index
      %16 = vector.load %arg6[%c0_7, %c0_8] : memref<1152x128xbf16, #tpu.memory_space<vmem>>, vector<128x128xbf16>
      %cst_9 = arith.constant dense<0.000000e+00> : vector<8x128xf32>
      %17 = tpu.matmul %14, %16, %cst_9 {dimension_numbers = #tpu.dot_dimension_numbers<[1], [0], [0], [1], [0, 0, 1, 1], [], []>} : vector<8x128xbf16>, vector<128x128xbf16>, vector<8x128xf32> -> vector<8x128xf32>
      %18 = arith.addf %15, %17 : vector<8x128xf32>
      %c0_10 = arith.constant 0 : index
      %c0_11 = arith.constant 0 : index
      %19 = vector.load %arg7[%c0_10, %c0_11] : memref<8x128xf32, #tpu.memory_space<vmem>>, vector<8x128xf32>
      tpu.vector_store %arg7[%c0_10, %c0_11], %18 {strides = array<i32>} : memref<8x128xf32, #tpu.memory_space<vmem>>, vector<8x128xf32>,
      %c0_12 = arith.constant 0 : index
      %c0_13 = arith.constant 0 : index
      %20 = vector.load %arg4[%c0_12, %c0_13] : memref<12x128xf32, #tpu.memory_space<vmem>>, vector<1x128xf32>
      %c1 = arith.constant 1 : index
      %c0_14 = arith.constant 0 : index
      %21 = vector.load %arg4[%c1, %c0_14] : memref<12x128xf32, #tpu.memory_space<vmem>>, vector<1x128xf32>
      %c2 = arith.constant 2 : index
      %c0_15 = arith.constant 0 : index
      %22 = vector.load %arg4[%c2, %c0_15] : memref<12x128xf32, #tpu.memory_space<vmem>>, vector<1x128xf32>
      %c3 = arith.constant 3 : index
      %c0_16 = arith.constant 0 : index
      %23 = vector.load %arg4[%c3, %c0_16] : memref<12x128xf32, #tpu.memory_space<vmem>>, vector<1x128xf32>
      %c4 = arith.constant 4 : index
      %c0_17 = arith.constant 0 : index
      %24 = vector.load %arg4[%c4, %c0_17] : memref<12x128xf32, #tpu.memory_space<vmem>>, vector<1x128xf32>
      %c5 = arith.constant 5 : index
      %c0_18 = arith.constant 0 : index
      %25 = vector.load %arg4[%c5, %c0_18] : memref<12x128xf32, #tpu.memory_space<vmem>>, vector<1x128xf32>
      %c6 = arith.constant 6 : index
      %c0_19 = arith.constant 0 : index
      %26 = vector.load %arg4[%c6, %c0_19] : memref<12x128xf32, #tpu.memory_space<vmem>>, vector<1x128xf32>
      %c7 = arith.constant 7 : index
      %c0_20 = arith.constant 0 : index
      %27 = vector.load %arg4[%c7, %c0_20] : memref<12x128xf32, #tpu.memory_space<vmem>>, vector<1x128xf32>
      %c8 = arith.constant 8 : index
      %c0_21 = arith.constant 0 : index
      %28 = vector.load %arg4[%c8, %c0_21] : memref<12x128xf32, #tpu.memory_space<vmem>>, vector<1x128xf32>
      %c9 = arith.constant 9 : index
      %c0_22 = arith.constant 0 : index
      %29 = vector.load %arg4[%c9, %c0_22] : memref<12x128xf32, #tpu.memory_space<vmem>>, vector<1x128xf32>
      %c10 = arith.constant 10 : index
      %c0_23 = arith.constant 0 : index
      %30 = vector.load %arg4[%c10, %c0_23] : memref<12x128xf32, #tpu.memory_space<vmem>>, vector<1x128xf32>
      %c11 = arith.constant 11 : index
      %c0_24 = arith.constant 0 : index
      %31 = vector.load %arg4[%c11, %c0_24] : memref<12x128xf32, #tpu.memory_space<vmem>>, vector<1x128xf32>
      %32 = vector.broadcast %20 : vector<1x128xf32> to vector<8x128xf32>
      %33 = arith.cmpf oge, %6, %32 : vector<8x128xf32>
      %34 = arith.extui %33 : vector<8x128xi1> to vector<8x128xi32>
      %35 = arith.sitofp %34 : vector<8x128xi32> to vector<8x128xf32>
      %36 = vector.broadcast %21 : vector<1x128xf32> to vector<8x128xf32>
      %37 = arith.cmpf oge, %6, %36 : vector<8x128xf32>
      %38 = arith.extui %37 : vector<8x128xi1> to vector<8x128xi32>
      %39 = arith.sitofp %38 : vector<8x128xi32> to vector<8x128xf32>
      %40 = vector.broadcast %22 : vector<1x128xf32> to vector<8x128xf32>
      %41 = arith.cmpf oge, %6, %40 : vector<8x128xf32>
      %42 = arith.extui %41 : vector<8x128xi1> to vector<8x128xi32>
      %43 = arith.sitofp %42 : vector<8x128xi32> to vector<8x128xf32>
      %44 = vector.broadcast %23 : vector<1x128xf32> to vector<8x128xf32>
      %45 = arith.cmpf oge, %6, %44 : vector<8x128xf32>
      %46 = arith.extui %45 : vector<8x128xi1> to vector<8x128xi32>
      %47 = arith.sitofp %46 : vector<8x128xi32> to vector<8x128xf32>
      %48 = vector.broadcast %24 : vector<1x128xf32> to vector<8x128xf32>
      %49 = arith.cmpf oge, %6, %48 : vector<8x128xf32>
      %50 = arith.extui %49 : vector<8x128xi1> to vector<8x128xi32>
      %51 = arith.sitofp %50 : vector<8x128xi32> to vector<8x128xf32>
      %52 = vector.broadcast %25 : vector<1x128xf32> to vector<8x128xf32>
      %53 = arith.cmpf oge, %6, %52 : vector<8x128xf32>
      %54 = arith.extui %53 : vector<8x128xi1> to vector<8x128xi32>
      %55 = arith.sitofp %54 : vector<8x128xi32> to vector<8x128xf32>
      %56 = vector.broadcast %26 : vector<1x128xf32> to vector<8x128xf32>
      %57 = arith.cmpf oge, %6, %56 : vector<8x128xf32>
      %58 = arith.extui %57 : vector<8x128xi1> to vector<8x128xi32>
      %59 = arith.sitofp %58 : vector<8x128xi32> to vector<8x128xf32>
      %60 = vector.broadcast %27 : vector<1x128xf32> to vector<8x128xf32>
      %61 = arith.cmpf oge, %6, %60 : vector<8x128xf32>
      %62 = arith.extui %61 : vector<8x128xi1> to vector<8x128xi32>
      %63 = arith.sitofp %62 : vector<8x128xi32> to vector<8x128xf32>
      %64 = vector.broadcast %28 : vector<1x128xf32> to vector<8x128xf32>
      %65 = arith.cmpf oge, %6, %64 : vector<8x128xf32>
      %66 = arith.extui %65 : vector<8x128xi1> to vector<8x128xi32>
      %67 = arith.sitofp %66 : vector<8x128xi32> to vector<8x128xf32>
      %68 = vector.broadcast %29 : vector<1x128xf32> to vector<8x128xf32>
      %69 = arith.cmpf oge, %6, %68 : vector<8x128xf32>
      %70 = arith.extui %69 : vector<8x128xi1> to vector<8x128xi32>
      %71 = arith.sitofp %70 : vector<8x128xi32> to vector<8x128xf32>
      %72 = vector.broadcast %30 : vector<1x128xf32> to vector<8x128xf32>
      %73 = arith.cmpf oge, %6, %72 : vector<8x128xf32>
      %74 = arith.extui %73 : vector<8x128xi1> to vector<8x128xi32>
      %75 = arith.sitofp %74 : vector<8x128xi32> to vector<8x128xf32>
      %76 = vector.broadcast %31 : vector<1x128xf32> to vector<8x128xf32>
      %77 = arith.cmpf oge, %6, %76 : vector<8x128xf32>
      %78 = arith.extui %77 : vector<8x128xi1> to vector<8x128xi32>
      %79 = arith.sitofp %78 : vector<8x128xi32> to vector<8x128xf32>
      %80 = arith.subf %35, %39 : vector<8x128xf32>
      %81 = arith.subf %39, %43 : vector<8x128xf32>
      %82 = arith.subf %43, %47 : vector<8x128xf32>
      %83 = arith.subf %47, %51 : vector<8x128xf32>
      %84 = arith.subf %51, %55 : vector<8x128xf32>
      %85 = arith.subf %55, %59 : vector<8x128xf32>
      %86 = arith.subf %59, %63 : vector<8x128xf32>
      %87 = arith.subf %63, %67 : vector<8x128xf32>
      %88 = arith.subf %67, %71 : vector<8x128xf32>
      %89 = arith.subf %71, %75 : vector<8x128xf32>
      %90 = arith.subf %75, %79 : vector<8x128xf32>
      %91 = vector.broadcast %20 : vector<1x128xf32> to vector<8x128xf32>
      %92 = arith.subf %6, %91 : vector<8x128xf32>
      %c0_25 = arith.constant 0 : index
      %c0_26 = arith.constant 0 : index
      %93 = vector.load %arg5[%c0_25, %c0_26] : memref<30x128xf32, #tpu.memory_space<vmem>>, vector<1x128xf32>
      %94 = vector.broadcast %93 : vector<1x128xf32> to vector<8x128xf32>
      %95 = arith.mulf %92, %94 : vector<8x128xf32>
      %96 = arith.mulf %95, %80 : vector<8x128xf32>
      %97 = vector.broadcast %21 : vector<1x128xf32> to vector<8x128xf32>
      %98 = arith.subf %6, %97 : vector<8x128xf32>
      %c1_27 = arith.constant 1 : index
      %c0_28 = arith.constant 0 : index
      %99 = vector.load %arg5[%c1_27, %c0_28] : memref<30x128xf32, #tpu.memory_space<vmem>>, vector<1x128xf32>
      %100 = vector.broadcast %99 : vector<1x128xf32> to vector<8x128xf32>
      %101 = arith.mulf %98, %100 : vector<8x128xf32>
      %102 = arith.mulf %101, %81 : vector<8x128xf32>
      %103 = vector.broadcast %22 : vector<1x128xf32> to vector<8x128xf32>
      %104 = arith.subf %6, %103 : vector<8x128xf32>
      %c2_29 = arith.constant 2 : index
      %c0_30 = arith.constant 0 : index
      %105 = vector.load %arg5[%c2_29, %c0_30] : memref<30x128xf32, #tpu.memory_space<vmem>>, vector<1x128xf32>
      %106 = vector.broadcast %105 : vector<1x128xf32> to vector<8x128xf32>
      %107 = arith.mulf %104, %106 : vector<8x128xf32>
      %108 = arith.mulf %107, %82 : vector<8x128xf32>
      %109 = vector.broadcast %23 : vector<1x128xf32> to vector<8x128xf32>
      %110 = arith.subf %6, %109 : vector<8x128xf32>
      %c3_31 = arith.constant 3 : index
      %c0_32 = arith.constant 0 : index
      %111 = vector.load %arg5[%c3_31, %c0_32] : memref<30x128xf32, #tpu.memory_space<vmem>>, vector<1x128xf32>
      %112 = vector.broadcast %111 : vector<1x128xf32> to vector<8x128xf32>
      %113 = arith.mulf %110, %112 : vector<8x128xf32>
      %114 = arith.mulf %113, %83 : vector<8x128xf32>
      %115 = vector.broadcast %24 : vector<1x128xf32> to vector<8x128xf32>
      %116 = arith.subf %6, %115 : vector<8x128xf32>
      %c4_33 = arith.constant 4 : index
      %c0_34 = arith.constant 0 : index
      %117 = vector.load %arg5[%c4_33, %c0_34] : memref<30x128xf32, #tpu.memory_space<vmem>>, vector<1x128xf32>
      %118 = vector.broadcast %117 : vector<1x128xf32> to vector<8x128xf32>
      %119 = arith.mulf %116, %118 : vector<8x128xf32>
      %120 = arith.mulf %119, %84 : vector<8x128xf32>
      %121 = vector.broadcast %25 : vector<1x128xf32> to vector<8x128xf32>
      %122 = arith.subf %6, %121 : vector<8x128xf32>
      %c5_35 = arith.constant 5 : index
      %c0_36 = arith.constant 0 : index
      %123 = vector.load %arg5[%c5_35, %c0_36] : memref<30x128xf32, #tpu.memory_space<vmem>>, vector<1x128xf32>
      %124 = vector.broadcast %123 : vector<1x128xf32> to vector<8x128xf32>
      %125 = arith.mulf %122, %124 : vector<8x128xf32>
      %126 = arith.mulf %125, %85 : vector<8x128xf32>
      %127 = vector.broadcast %26 : vector<1x128xf32> to vector<8x128xf32>
      %128 = arith.subf %6, %127 : vector<8x128xf32>
      %c6_37 = arith.constant 6 : index
      %c0_38 = arith.constant 0 : index
      %129 = vector.load %arg5[%c6_37, %c0_38] : memref<30x128xf32, #tpu.memory_space<vmem>>, vector<1x128xf32>
      %130 = vector.broadcast %129 : vector<1x128xf32> to vector<8x128xf32>
      %131 = arith.mulf %128, %130 : vector<8x128xf32>
      %132 = arith.mulf %131, %86 : vector<8x128xf32>
      %133 = vector.broadcast %27 : vector<1x128xf32> to vector<8x128xf32>
      %134 = arith.subf %6, %133 : vector<8x128xf32>
      %c7_39 = arith.constant 7 : index
      %c0_40 = arith.constant 0 : index
      %135 = vector.load %arg5[%c7_39, %c0_40] : memref<30x128xf32, #tpu.memory_space<vmem>>, vector<1x128xf32>
      %136 = vector.broadcast %135 : vector<1x128xf32> to vector<8x128xf32>
      %137 = arith.mulf %134, %136 : vector<8x128xf32>
      %138 = arith.mulf %137, %87 : vector<8x128xf32>
      %139 = vector.broadcast %28 : vector<1x128xf32> to vector<8x128xf32>
      %140 = arith.subf %6, %139 : vector<8x128xf32>
      %c8_41 = arith.constant 8 : index
      %c0_42 = arith.constant 0 : index
      %141 = vector.load %arg5[%c8_41, %c0_42] : memref<30x128xf32, #tpu.memory_space<vmem>>, vector<1x128xf32>
      %142 = vector.broadcast %141 : vector<1x128xf32> to vector<8x128xf32>
      %143 = arith.mulf %140, %142 : vector<8x128xf32>
      %144 = arith.mulf %143, %88 : vector<8x128xf32>
      %145 = vector.broadcast %29 : vector<1x128xf32> to vector<8x128xf32>
      %146 = arith.subf %6, %145 : vector<8x128xf32>
      %c9_43 = arith.constant 9 : index
      %c0_44 = arith.constant 0 : index
      %147 = vector.load %arg5[%c9_43, %c0_44] : memref<30x128xf32, #tpu.memory_space<vmem>>, vector<1x128xf32>
      %148 = vector.broadcast %147 : vector<1x128xf32> to vector<8x128xf32>
      %149 = arith.mulf %146, %148 : vector<8x128xf32>
      %150 = arith.mulf %149, %89 : vector<8x128xf32>
      %151 = vector.broadcast %30 : vector<1x128xf32> to vector<8x128xf32>
      %152 = arith.subf %6, %151 : vector<8x128xf32>
      %c10_45 = arith.constant 10 : index
      %c0_46 = arith.constant 0 : index
      %153 = vector.load %arg5[%c10_45, %c0_46] : memref<30x128xf32, #tpu.memory_space<vmem>>, vector<1x128xf32>
      %154 = vector.broadcast %153 : vector<1x128xf32> to vector<8x128xf32>
      %155 = arith.mulf %152, %154 : vector<8x128xf32>
      %156 = arith.mulf %155, %90 : vector<8x128xf32>
      %157 = arith.subf %96, %102 : vector<8x128xf32>
      %158 = arith.addf %157, %81 : vector<8x128xf32>
      %159 = arith.subf %102, %108 : vector<8x128xf32>
      %160 = arith.addf %159, %82 : vector<8x128xf32>
      %161 = arith.subf %108, %114 : vector<8x128xf32>
      %162 = arith.addf %161, %83 : vector<8x128xf32>
      %163 = arith.subf %114, %120 : vector<8x128xf32>
      %164 = arith.addf %163, %84 : vector<8x128xf32>
      %165 = arith.subf %120, %126 : vector<8x128xf32>
      %166 = arith.addf %165, %85 : vector<8x128xf32>
      %167 = arith.subf %126, %132 : vector<8x128xf32>
      %168 = arith.addf %167, %86 : vector<8x128xf32>
      %169 = arith.subf %132, %138 : vector<8x128xf32>
      %170 = arith.addf %169, %87 : vector<8x128xf32>
      %171 = arith.subf %138, %144 : vector<8x128xf32>
      %172 = arith.addf %171, %88 : vector<8x128xf32>
      %173 = arith.subf %144, %150 : vector<8x128xf32>
      %174 = arith.addf %173, %89 : vector<8x128xf32>
      %175 = arith.subf %150, %156 : vector<8x128xf32>
      %176 = arith.addf %175, %90 : vector<8x128xf32>
      %177 = vector.broadcast %20 : vector<1x128xf32> to vector<8x128xf32>
      %178 = arith.subf %6, %177 : vector<8x128xf32>
      %c11_47 = arith.constant 11 : index
      %c0_48 = arith.constant 0 : index
      %179 = vector.load %arg5[%c11_47, %c0_48] : memref<30x128xf32, #tpu.memory_space<vmem>>, vector<1x128xf32>
      %180 = vector.broadcast %179 : vector<1x128xf32> to vector<8x128xf32>
      %181 = arith.mulf %178, %180 : vector<8x128xf32>
      %182 = arith.mulf %181, %158 : vector<8x128xf32>
      %183 = vector.broadcast %21 : vector<1x128xf32> to vector<8x128xf32>
      %184 = arith.subf %6, %183 : vector<8x128xf32>
      %c12 = arith.constant 12 : index
      %c0_49 = arith.constant 0 : index
      %185 = vector.load %arg5[%c12, %c0_49] : memref<30x128xf32, #tpu.memory_space<vmem>>, vector<1x128xf32>
      %186 = vector.broadcast %185 : vector<1x128xf32> to vector<8x128xf32>
      %187 = arith.mulf %184, %186 : vector<8x128xf32>
      %188 = arith.mulf %187, %160 : vector<8x128xf32>
      %189 = vector.broadcast %22 : vector<1x128xf32> to vector<8x128xf32>
      %190 = arith.subf %6, %189 : vector<8x128xf32>
      %c13 = arith.constant 13 : index
      %c0_50 = arith.constant 0 : index
      %191 = vector.load %arg5[%c13, %c0_50] : memref<30x128xf32, #tpu.memory_space<vmem>>, vector<1x128xf32>
      %192 = vector.broadcast %191 : vector<1x128xf32> to vector<8x128xf32>
      %193 = arith.mulf %190, %192 : vector<8x128xf32>
      %194 = arith.mulf %193, %162 : vector<8x128xf32>
      %195 = vector.broadcast %23 : vector<1x128xf32> to vector<8x128xf32>
      %196 = arith.subf %6, %195 : vector<8x128xf32>
      %c14 = arith.constant 14 : index
      %c0_51 = arith.constant 0 : index
      %197 = vector.load %arg5[%c14, %c0_51] : memref<30x128xf32, #tpu.memory_space<vmem>>, vector<1x128xf32>
      %198 = vector.broadcast %197 : vector<1x128xf32> to vector<8x128xf32>
      %199 = arith.mulf %196, %198 : vector<8x128xf32>
      %200 = arith.mulf %199, %164 : vector<8x128xf32>
      %201 = vector.broadcast %24 : vector<1x128xf32> to vector<8x128xf32>
      %202 = arith.subf %6, %201 : vector<8x128xf32>
      %c15 = arith.constant 15 : index
      %c0_52 = arith.constant 0 : index
      %203 = vector.load %arg5[%c15, %c0_52] : memref<30x128xf32, #tpu.memory_space<vmem>>, vector<1x128xf32>
      %204 = vector.broadcast %203 : vector<1x128xf32> to vector<8x128xf32>
      %205 = arith.mulf %202, %204 : vector<8x128xf32>
      %206 = arith.mulf %205, %166 : vector<8x128xf32>
      %207 = vector.broadcast %25 : vector<1x128xf32> to vector<8x128xf32>
      %208 = arith.subf %6, %207 : vector<8x128xf32>
      %c16 = arith.constant 16 : index
      %c0_53 = arith.constant 0 : index
      %209 = vector.load %arg5[%c16, %c0_53] : memref<30x128xf32, #tpu.memory_space<vmem>>, vector<1x128xf32>
      %210 = vector.broadcast %209 : vector<1x128xf32> to vector<8x128xf32>
      %211 = arith.mulf %208, %210 : vector<8x128xf32>
      %212 = arith.mulf %211, %168 : vector<8x128xf32>
      %213 = vector.broadcast %26 : vector<1x128xf32> to vector<8x128xf32>
      %214 = arith.subf %6, %213 : vector<8x128xf32>
      %c17 = arith.constant 17 : index
      %c0_54 = arith.constant 0 : index
      %215 = vector.load %arg5[%c17, %c0_54] : memref<30x128xf32, #tpu.memory_space<vmem>>, vector<1x128xf32>
      %216 = vector.broadcast %215 : vector<1x128xf32> to vector<8x128xf32>
      %217 = arith.mulf %214, %216 : vector<8x128xf32>
      %218 = arith.mulf %217, %170 : vector<8x128xf32>
      %219 = vector.broadcast %27 : vector<1x128xf32> to vector<8x128xf32>
      %220 = arith.subf %6, %219 : vector<8x128xf32>
      %c18 = arith.constant 18 : index
      %c0_55 = arith.constant 0 : index
      %221 = vector.load %arg5[%c18, %c0_55] : memref<30x128xf32, #tpu.memory_space<vmem>>, vector<1x128xf32>
      %222 = vector.broadcast %221 : vector<1x128xf32> to vector<8x128xf32>
      %223 = arith.mulf %220, %222 : vector<8x128xf32>
      %224 = arith.mulf %223, %172 : vector<8x128xf32>
      %225 = vector.broadcast %28 : vector<1x128xf32> to vector<8x128xf32>
      %226 = arith.subf %6, %225 : vector<8x128xf32>
      %c19 = arith.constant 19 : index
      %c0_56 = arith.constant 0 : index
      %227 = vector.load %arg5[%c19, %c0_56] : memref<30x128xf32, #tpu.memory_space<vmem>>, vector<1x128xf32>
      %228 = vector.broadcast %227 : vector<1x128xf32> to vector<8x128xf32>
      %229 = arith.mulf %226, %228 : vector<8x128xf32>
      %230 = arith.mulf %229, %174 : vector<8x128xf32>
      %231 = vector.broadcast %29 : vector<1x128xf32> to vector<8x128xf32>
      %232 = arith.subf %6, %231 : vector<8x128xf32>
      %c20 = arith.constant 20 : index
      %c0_57 = arith.constant 0 : index
      %233 = vector.load %arg5[%c20, %c0_57] : memref<30x128xf32, #tpu.memory_space<vmem>>, vector<1x128xf32>
      %234 = vector.broadcast %233 : vector<1x128xf32> to vector<8x128xf32>
      %235 = arith.mulf %232, %234 : vector<8x128xf32>
      %236 = arith.mulf %235, %176 : vector<8x128xf32>
      %237 = arith.subf %182, %188 : vector<8x128xf32>
      %238 = arith.addf %237, %160 : vector<8x128xf32>
      %239 = arith.subf %188, %194 : vector<8x128xf32>
      %240 = arith.addf %239, %162 : vector<8x128xf32>
      %241 = arith.subf %194, %200 : vector<8x128xf32>
      %242 = arith.addf %241, %164 : vector<8x128xf32>
      %243 = arith.subf %200, %206 : vector<8x128xf32>
      %244 = arith.addf %243, %166 : vector<8x128xf32>
      %245 = arith.subf %206, %212 : vector<8x128xf32>
      %246 = arith.addf %245, %168 : vector<8x128xf32>
      %247 = arith.subf %212, %218 : vector<8x128xf32>
      %248 = arith.addf %247, %170 : vector<8x128xf32>
      %249 = arith.subf %218, %224 : vector<8x128xf32>
      %250 = arith.addf %249, %172 : vector<8x128xf32>
      %251 = arith.subf %224, %230 : vector<8x128xf32>
      %252 = arith.addf %251, %174 : vector<8x128xf32>
      %253 = arith.subf %230, %236 : vector<8x128xf32>
      %254 = arith.addf %253, %176 : vector<8x128xf32>
      %255 = vector.broadcast %20 : vector<1x128xf32> to vector<8x128xf32>
      %256 = arith.subf %6, %255 : vector<8x128xf32>
      %c21 = arith.constant 21 : index
      %c0_58 = arith.constant 0 : index
      %257 = vector.load %arg5[%c21, %c0_58] : memref<30x128xf32, #tpu.memory_space<vmem>>, vector<1x128xf32>
      %258 = vector.broadcast %257 : vector<1x128xf32> to vector<8x128xf32>
      %259 = arith.mulf %256, %258 : vector<8x128xf32>
      %260 = arith.mulf %259, %238 : vector<8x128xf32>
      %261 = vector.broadcast %21 : vector<1x128xf32> to vector<8x128xf32>
      %262 = arith.subf %6, %261 : vector<8x128xf32>
      %c22 = arith.constant 22 : index
      %c0_59 = arith.constant 0 : index
      %263 = vector.load %arg5[%c22, %c0_59] : memref<30x128xf32, #tpu.memory_space<vmem>>, vector<1x128xf32>
      %264 = vector.broadcast %263 : vector<1x128xf32> to vector<8x128xf32>
      %265 = arith.mulf %262, %264 : vector<8x128xf32>
      %266 = arith.mulf %265, %240 : vector<8x128xf32>
      %267 = vector.broadcast %22 : vector<1x128xf32> to vector<8x128xf32>
      %268 = arith.subf %6, %267 : vector<8x128xf32>
      %c23 = arith.constant 23 : index
      %c0_60 = arith.constant 0 : index
      %269 = vector.load %arg5[%c23, %c0_60] : memref<30x128xf32, #tpu.memory_space<vmem>>, vector<1x128xf32>
      %270 = vector.broadcast %269 : vector<1x128xf32> to vector<8x128xf32>
      %271 = arith.mulf %268, %270 : vector<8x128xf32>
      %272 = arith.mulf %271, %242 : vector<8x128xf32>
      %273 = vector.broadcast %23 : vector<1x128xf32> to vector<8x128xf32>
      %274 = arith.subf %6, %273 : vector<8x128xf32>
      %c24 = arith.constant 24 : index
      %c0_61 = arith.constant 0 : index
      %275 = vector.load %arg5[%c24, %c0_61] : memref<30x128xf32, #tpu.memory_space<vmem>>, vector<1x128xf32>
      %276 = vector.broadcast %275 : vector<1x128xf32> to vector<8x128xf32>
      %277 = arith.mulf %274, %276 : vector<8x128xf32>
      %278 = arith.mulf %277, %244 : vector<8x128xf32>
      %279 = vector.broadcast %24 : vector<1x128xf32> to vector<8x128xf32>
      %280 = arith.subf %6, %279 : vector<8x128xf32>
      %c25 = arith.constant 25 : index
      %c0_62 = arith.constant 0 : index
      %281 = vector.load %arg5[%c25, %c0_62] : memref<30x128xf32, #tpu.memory_space<vmem>>, vector<1x128xf32>
      %282 = vector.broadcast %281 : vector<1x128xf32> to vector<8x128xf32>
      %283 = arith.mulf %280, %282 : vector<8x128xf32>
      %284 = arith.mulf %283, %246 : vector<8x128xf32>
      %285 = vector.broadcast %25 : vector<1x128xf32> to vector<8x128xf32>
      %286 = arith.subf %6, %285 : vector<8x128xf32>
      %c26 = arith.constant 26 : index
      %c0_63 = arith.constant 0 : index
      %287 = vector.load %arg5[%c26, %c0_63] : memref<30x128xf32, #tpu.memory_space<vmem>>, vector<1x128xf32>
      %288 = vector.broadcast %287 : vector<1x128xf32> to vector<8x128xf32>
      %289 = arith.mulf %286, %288 : vector<8x128xf32>
      %290 = arith.mulf %289, %248 : vector<8x128xf32>
      %291 = vector.broadcast %26 : vector<1x128xf32> to vector<8x128xf32>
      %292 = arith.subf %6, %291 : vector<8x128xf32>
      %c27 = arith.constant 27 : index
      %c0_64 = arith.constant 0 : index
      %293 = vector.load %arg5[%c27, %c0_64] : memref<30x128xf32, #tpu.memory_space<vmem>>, vector<1x128xf32>
      %294 = vector.broadcast %293 : vector<1x128xf32> to vector<8x128xf32>
      %295 = arith.mulf %292, %294 : vector<8x128xf32>
      %296 = arith.mulf %295, %250 : vector<8x128xf32>
      %297 = vector.broadcast %27 : vector<1x128xf32> to vector<8x128xf32>
      %298 = arith.subf %6, %297 : vector<8x128xf32>
      %c28 = arith.constant 28 : index
      %c0_65 = arith.constant 0 : index
      %299 = vector.load %arg5[%c28, %c0_65] : memref<30x128xf32, #tpu.memory_space<vmem>>, vector<1x128xf32>
      %300 = vector.broadcast %299 : vector<1x128xf32> to vector<8x128xf32>
      %301 = arith.mulf %298, %300 : vector<8x128xf32>
      %302 = arith.mulf %301, %252 : vector<8x128xf32>
      %303 = vector.broadcast %28 : vector<1x128xf32> to vector<8x128xf32>
      %304 = arith.subf %6, %303 : vector<8x128xf32>
      %c29 = arith.constant 29 : index
      %c0_66 = arith.constant 0 : index
      %305 = vector.load %arg5[%c29, %c0_66] : memref<30x128xf32, #tpu.memory_space<vmem>>, vector<1x128xf32>
      %306 = vector.broadcast %305 : vector<1x128xf32> to vector<8x128xf32>
      %307 = arith.mulf %304, %306 : vector<8x128xf32>
      %308 = arith.mulf %307, %254 : vector<8x128xf32>
      %309 = arith.subf %260, %266 : vector<8x128xf32>
      %310 = arith.addf %309, %240 : vector<8x128xf32>
      %311 = arith.truncf %310 : vector<8x128xf32> to vector<8x128xbf16>
      %c0_67 = arith.constant 0 : index
      %c0_68 = arith.constant 0 : index
      %312 = vector.load %arg7[%c0_67, %c0_68] : memref<8x128xf32, #tpu.memory_space<vmem>>, vector<8x128xf32>
      %c128 = arith.constant 128 : index
      %c0_69 = arith.constant 0 : index
      %313 = vector.load %arg6[%c128, %c0_69] : memref<1152x128xbf16, #tpu.memory_space<vmem>>, vector<128x128xbf16>
      %cst_70 = arith.constant dense<0.000000e+00> : vector<8x128xf32>
      %314 = tpu.matmul %311, %313, %cst_70 {dimension_numbers = #tpu.dot_dimension_numbers<[1], [0], [0], [1], [0, 0, 1, 1], [], []>} : vector<8x128xbf16>, vector<128x128xbf16>, vector<8x128xf32> -> vector<8x128xf32>
      %315 = arith.addf %312, %314 : vector<8x128xf32>
      %c0_71 = arith.constant 0 : index
      %c0_72 = arith.constant 0 : index
      %316 = vector.load %arg7[%c0_71, %c0_72] : memref<8x128xf32, #tpu.memory_space<vmem>>, vector<8x128xf32>
      tpu.vector_store %arg7[%c0_71, %c0_72], %315 {strides = array<i32>} : memref<8x128xf32, #tpu.memory_space<vmem>>, vector<8x128xf32>,
      %317 = arith.subf %266, %272 : vector<8x128xf32>
      %318 = arith.addf %317, %242 : vector<8x128xf32>
      %319 = arith.truncf %318 : vector<8x128xf32> to vector<8x128xbf16>
      %c0_73 = arith.constant 0 : index
      %c0_74 = arith.constant 0 : index
      %320 = vector.load %arg7[%c0_73, %c0_74] : memref<8x128xf32, #tpu.memory_space<vmem>>, vector<8x128xf32>
      %c256 = arith.constant 256 : index
      %c0_75 = arith.constant 0 : index
      %321 = vector.load %arg6[%c256, %c0_75] : memref<1152x128xbf16, #tpu.memory_space<vmem>>, vector<128x128xbf16>
      %cst_76 = arith.constant dense<0.000000e+00> : vector<8x128xf32>
      %322 = tpu.matmul %319, %321, %cst_76 {dimension_numbers = #tpu.dot_dimension_numbers<[1], [0], [0], [1], [0, 0, 1, 1], [], []>} : vector<8x128xbf16>, vector<128x128xbf16>, vector<8x128xf32> -> vector<8x128xf32>
      %323 = arith.addf %320, %322 : vector<8x128xf32>
      %c0_77 = arith.constant 0 : index
      %c0_78 = arith.constant 0 : index
      %324 = vector.load %arg7[%c0_77, %c0_78] : memref<8x128xf32, #tpu.memory_space<vmem>>, vector<8x128xf32>
      tpu.vector_store %arg7[%c0_77, %c0_78], %323 {strides = array<i32>} : memref<8x128xf32, #tpu.memory_space<vmem>>, vector<8x128xf32>,
      %325 = arith.subf %272, %278 : vector<8x128xf32>
      %326 = arith.addf %325, %244 : vector<8x128xf32>
      %327 = arith.truncf %326 : vector<8x128xf32> to vector<8x128xbf16>
      %c0_79 = arith.constant 0 : index
      %c0_80 = arith.constant 0 : index
      %328 = vector.load %arg7[%c0_79, %c0_80] : memref<8x128xf32, #tpu.memory_space<vmem>>, vector<8x128xf32>
      %c384 = arith.constant 384 : index
      %c0_81 = arith.constant 0 : index
      %329 = vector.load %arg6[%c384, %c0_81] : memref<1152x128xbf16, #tpu.memory_space<vmem>>, vector<128x128xbf16>
      %cst_82 = arith.constant dense<0.000000e+00> : vector<8x128xf32>
      %330 = tpu.matmul %327, %329, %cst_82 {dimension_numbers = #tpu.dot_dimension_numbers<[1], [0], [0], [1], [0, 0, 1, 1], [], []>} : vector<8x128xbf16>, vector<128x128xbf16>, vector<8x128xf32> -> vector<8x128xf32>
      %331 = arith.addf %328, %330 : vector<8x128xf32>
      %c0_83 = arith.constant 0 : index
      %c0_84 = arith.constant 0 : index
      %332 = vector.load %arg7[%c0_83, %c0_84] : memref<8x128xf32, #tpu.memory_space<vmem>>, vector<8x128xf32>
      tpu.vector_store %arg7[%c0_83, %c0_84], %331 {strides = array<i32>} : memref<8x128xf32, #tpu.memory_space<vmem>>, vector<8x128xf32>,
      %333 = arith.subf %278, %284 : vector<8x128xf32>
      %334 = arith.addf %333, %246 : vector<8x128xf32>
      %335 = arith.truncf %334 : vector<8x128xf32> to vector<8x128xbf16>
      %c0_85 = arith.constant 0 : index
      %c0_86 = arith.constant 0 : index
      %336 = vector.load %arg7[%c0_85, %c0_86] : memref<8x128xf32, #tpu.memory_space<vmem>>, vector<8x128xf32>
      %c512 = arith.constant 512 : index
      %c0_87 = arith.constant 0 : index
      %337 = vector.load %arg6[%c512, %c0_87] : memref<1152x128xbf16, #tpu.memory_space<vmem>>, vector<128x128xbf16>
      %cst_88 = arith.constant dense<0.000000e+00> : vector<8x128xf32>
      %338 = tpu.matmul %335, %337, %cst_88 {dimension_numbers = #tpu.dot_dimension_numbers<[1], [0], [0], [1], [0, 0, 1, 1], [], []>} : vector<8x128xbf16>, vector<128x128xbf16>, vector<8x128xf32> -> vector<8x128xf32>
      %339 = arith.addf %336, %338 : vector<8x128xf32>
      %c0_89 = arith.constant 0 : index
      %c0_90 = arith.constant 0 : index
      %340 = vector.load %arg7[%c0_89, %c0_90] : memref<8x128xf32, #tpu.memory_space<vmem>>, vector<8x128xf32>
      tpu.vector_store %arg7[%c0_89, %c0_90], %339 {strides = array<i32>} : memref<8x128xf32, #tpu.memory_space<vmem>>, vector<8x128xf32>,
      %341 = arith.subf %284, %290 : vector<8x128xf32>
      %342 = arith.addf %341, %248 : vector<8x128xf32>
      %343 = arith.truncf %342 : vector<8x128xf32> to vector<8x128xbf16>
      %c0_91 = arith.constant 0 : index
      %c0_92 = arith.constant 0 : index
      %344 = vector.load %arg7[%c0_91, %c0_92] : memref<8x128xf32, #tpu.memory_space<vmem>>, vector<8x128xf32>
      %c640 = arith.constant 640 : index
      %c0_93 = arith.constant 0 : index
      %345 = vector.load %arg6[%c640, %c0_93] : memref<1152x128xbf16, #tpu.memory_space<vmem>>, vector<128x128xbf16>
      %cst_94 = arith.constant dense<0.000000e+00> : vector<8x128xf32>
      %346 = tpu.matmul %343, %345, %cst_94 {dimension_numbers = #tpu.dot_dimension_numbers<[1], [0], [0], [1], [0, 0, 1, 1], [], []>} : vector<8x128xbf16>, vector<128x128xbf16>, vector<8x128xf32> -> vector<8x128xf32>
      %347 = arith.addf %344, %346 : vector<8x128xf32>
      %c0_95 = arith.constant 0 : index
      %c0_96 = arith.constant 0 : index
      %348 = vector.load %arg7[%c0_95, %c0_96] : memref<8x128xf32, #tpu.memory_space<vmem>>, vector<8x128xf32>
      tpu.vector_store %arg7[%c0_95, %c0_96], %347 {strides = array<i32>} : memref<8x128xf32, #tpu.memory_space<vmem>>, vector<8x128xf32>,
      %349 = arith.subf %290, %296 : vector<8x128xf32>
      %350 = arith.addf %349, %250 : vector<8x128xf32>
      %351 = arith.truncf %350 : vector<8x128xf32> to vector<8x128xbf16>
      %c0_97 = arith.constant 0 : index
      %c0_98 = arith.constant 0 : index
      %352 = vector.load %arg7[%c0_97, %c0_98] : memref<8x128xf32, #tpu.memory_space<vmem>>, vector<8x128xf32>
      %c768 = arith.constant 768 : index
      %c0_99 = arith.constant 0 : index
      %353 = vector.load %arg6[%c768, %c0_99] : memref<1152x128xbf16, #tpu.memory_space<vmem>>, vector<128x128xbf16>
      %cst_100 = arith.constant dense<0.000000e+00> : vector<8x128xf32>
      %354 = tpu.matmul %351, %353, %cst_100 {dimension_numbers = #tpu.dot_dimension_numbers<[1], [0], [0], [1], [0, 0, 1, 1], [], []>} : vector<8x128xbf16>, vector<128x128xbf16>, vector<8x128xf32> -> vector<8x128xf32>
      %355 = arith.addf %352, %354 : vector<8x128xf32>
      %c0_101 = arith.constant 0 : index
      %c0_102 = arith.constant 0 : index
      %356 = vector.load %arg7[%c0_101, %c0_102] : memref<8x128xf32, #tpu.memory_space<vmem>>, vector<8x128xf32>
      tpu.vector_store %arg7[%c0_101, %c0_102], %355 {strides = array<i32>} : memref<8x128xf32, #tpu.memory_space<vmem>>, vector<8x128xf32>,
      %357 = arith.subf %296, %302 : vector<8x128xf32>
      %358 = arith.addf %357, %252 : vector<8x128xf32>
      %359 = arith.truncf %358 : vector<8x128xf32> to vector<8x128xbf16>
      %c0_103 = arith.constant 0 : index
      %c0_104 = arith.constant 0 : index
      %360 = vector.load %arg7[%c0_103, %c0_104] : memref<8x128xf32, #tpu.memory_space<vmem>>, vector<8x128xf32>
      %c896 = arith.constant 896 : index
      %c0_105 = arith.constant 0 : index
      %361 = vector.load %arg6[%c896, %c0_105] : memref<1152x128xbf16, #tpu.memory_space<vmem>>, vector<128x128xbf16>
      %cst_106 = arith.constant dense<0.000000e+00> : vector<8x128xf32>
      %362 = tpu.matmul %359, %361, %cst_106 {dimension_numbers = #tpu.dot_dimension_numbers<[1], [0], [0], [1], [0, 0, 1, 1], [], []>} : vector<8x128xbf16>, vector<128x128xbf16>, vector<8x128xf32> -> vector<8x128xf32>
      %363 = arith.addf %360, %362 : vector<8x128xf32>
      %c0_107 = arith.constant 0 : index
      %c0_108 = arith.constant 0 : index
      %364 = vector.load %arg7[%c0_107, %c0_108] : memref<8x128xf32, #tpu.memory_space<vmem>>, vector<8x128xf32>
      tpu.vector_store %arg7[%c0_107, %c0_108], %363 {strides = array<i32>} : memref<8x128xf32, #tpu.memory_space<vmem>>, vector<8x128xf32>,
      %365 = arith.subf %302, %308 : vector<8x128xf32>
      %366 = arith.addf %365, %254 : vector<8x128xf32>
      %367 = arith.truncf %366 : vector<8x128xf32> to vector<8x128xbf16>
      %c0_109 = arith.constant 0 : index
      %c0_110 = arith.constant 0 : index
      %368 = vector.load %arg7[%c0_109, %c0_110] : memref<8x128xf32, #tpu.memory_space<vmem>>, vector<8x128xf32>
      %c1024 = arith.constant 1024 : index
      %c0_111 = arith.constant 0 : index
      %369 = vector.load %arg6[%c1024, %c0_111] : memref<1152x128xbf16, #tpu.memory_space<vmem>>, vector<128x128xbf16>
      %cst_112 = arith.constant dense<0.000000e+00> : vector<8x128xf32>
      %370 = tpu.matmul %367, %369, %cst_112 {dimension_numbers = #tpu.dot_dimension_numbers<[1], [0], [0], [1], [0, 0, 1, 1], [], []>} : vector<8x128xbf16>, vector<128x128xbf16>, vector<8x128xf32> -> vector<8x128xf32>
      %371 = arith.addf %368, %370 : vector<8x128xf32>
      %c0_113 = arith.constant 0 : index
      %c0_114 = arith.constant 0 : index
      %372 = vector.load %arg7[%c0_113, %c0_114] : memref<8x128xf32, #tpu.memory_space<vmem>>, vector<8x128xf32>
      tpu.vector_store %arg7[%c0_113, %c0_114], %371 {strides = array<i32>} : memref<8x128xf32, #tpu.memory_space<vmem>>, vector<8x128xf32>,
    } else {
    }
    return
  }
  func.func @transform_0(%arg0: i32, %arg1: i32, %arg2: i32) -> (i32, i32) {
    %c0_i32 = arith.constant 0 : i32
    return %arg0, %arg2 : i32, i32
  }
  func.func @transform_1(%arg0: i32, %arg1: i32, %arg2: i32) -> (i32, i32) {
    %c0_i32 = arith.constant 0 : i32
    %c0_i32_0 = arith.constant 0 : i32
    return %c0_i32, %arg2 : i32, i32
  }
  func.func @transform_2(%arg0: i32, %arg1: i32, %arg2: i32) -> (i32, i32) {
    %c0_i32 = arith.constant 0 : i32
    %c0_i32_0 = arith.constant 0 : i32
    return %c0_i32, %arg2 : i32, i32
  }
  func.func @transform_3(%arg0: i32, %arg1: i32, %arg2: i32) -> (i32, i32) {
    %c0_i32 = arith.constant 0 : i32
    return %arg2, %arg1 : i32, i32
  }
  func.func @transform_4(%arg0: i32, %arg1: i32, %arg2: i32) -> (i32, i32) {
    %c0_i32 = arith.constant 0 : i32
    return %arg0, %arg1 : i32, i32
  }
}

</mosaic_0001>

<llo_original>
// kernel: tpu_custom_call.1
$region0: #{tpu_custom_call.1}
  #allocation0 [shape = 'u32[]', space=smem, size = 0x4, offset = 0x4, fixed_abs, tag = 'smem constant byte address 0x4 - core index']
  #allocation1 [shape = 'u32[144,128]{1,0:T(1,128)}', space=vmem, size = 0x12000, scoped, tag = 'internal scratch']
  #allocation2 [shape = 'bf16[8,1152]{1,0:T(8,128)(2,1)}', space=vmem, size = 0x4800, scoped, tag = 'scratch operand']
  %s0 = inlined_call_operand.hbm [shape: f32[8,128], index: 0, kind: input, shape index: {}]
  %s1 = inlined_call_operand.hbm [shape: f32[12,128], index: 1, kind: input, shape index: {}]
  %s2 = inlined_call_operand.hbm [shape: f32[30,128], index: 2, kind: input, shape index: {}]
  %s3 = inlined_call_operand.hbm [shape: bf16[1152,128], index: 3, kind: input, shape index: {}]
  %s4 = inlined_call_operand.hbm [shape: f32[8,128], index: 4, kind: output, shape index: {}]
  %s5 = sld [smem:[#allocation0]]
  $region50: #{tpu_custom_call.1} parent=0
    _
  %s7 = ssub.s32 1, %s5
  %s8 = scalar_select 0, %s7, %s5
  $region1: #{tpu_custom_call.1} parent=0
    #allocation3 [shape = 'u8[4096]{0}', space=vmem, size = 0x1000, scoped, tag = 'input window, operand 0, single buffered']
    #allocation4 [shape = 's32[1]{0}', space=sflag, size = 0x4, scoped, tag = 'scoped memory for tpu_custom_call.1']
    #allocation5 [shape = 's32[1]{0}', space=sflag, size = 0x4, scoped, tag = 'scoped memory for tpu_custom_call.1']
    #allocation6 [shape = 'u8[8192]{0}', space=vmem, size = 0x2000, scoped, tag = 'input window, operand 1, single buffered']
    #allocation7 [shape = 's32[1]{0}', space=sflag, size = 0x4, scoped, tag = 'scoped memory for tpu_custom_call.1']
    #allocation8 [shape = 'u8[16384]{0}', space=vmem, size = 0x4000, scoped, tag = 'input window, operand 2, single buffered']
    #allocation9 [shape = 'u8[294912]{0}', space=vmem, size = 0x48000, scoped, tag = 'input window, operand 3, single buffered']
    #allocation10 [shape = 's32[1]{0}', space=sflag, size = 0x4, scoped, tag = 'scoped memory for tpu_custom_call.1']
    #allocation11 [shape = 'u8[4096]{0}', space=vmem, size = 0x1000, scoped, tag = 'output window, operand 0, single buffered']
    %9 = vsyncpa [#allocation4], 0
    %10 = vsyncpa [#allocation7], 0
    %11 = vsyncpa [#allocation10], 0
    %12 = vsyncpa [#allocation5], 0
    // Predicated region
    $region2: #{tpu_custom_call.1} parent=1 // pred_check
      _
    $region3: #{tpu_custom_call.1} parent=1 // pred_check_branch
      %14 = sbr.rel (0) target = $region5
    $region4: #{tpu_custom_call.1} parent=1 // pred_region
      %s16 = ssub.s32 128, 128
      %17 = vsyncadd [#allocation4], %s16
      %s19 = sshll.u32 [#allocation3], 4
      %s20 = int_to_ptr.vmem [resolvable:$true] %s19
      %22 = dma.hbm_to_vmem [thread:$0]  %s0, 128, %s20, [#allocation4]
    $region5: #{tpu_custom_call.1} parent=1 // pred_fallthru
      _
    // Predicated region
    $region6: #{tpu_custom_call.1} parent=1 // pred_check
      _
    $region7: #{tpu_custom_call.1} parent=1 // pred_check_branch
      %24 = sbr.rel (0) target = $region9
    $region8: #{tpu_custom_call.1} parent=1 // pred_region
      %s26 = ssub.s32 256, 256
      %27 = vsyncadd [#allocation7], %s26
      %s28 = sshll.u32 [#allocation6], 4
      %s29 = int_to_ptr.vmem [resolvable:$true] %s28
      %34 = dma.hbm_to_vmem [thread:$0]  %s1, 256, %s29, [#allocation7], 128, 128, 8
    $region9: #{tpu_custom_call.1} parent=1 // pred_fallthru
      _
    // Predicated region
    $region10: #{tpu_custom_call.1} parent=1 // pred_check
      _
    $region11: #{tpu_custom_call.1} parent=1 // pred_check_branch
      %36 = sbr.rel (0) target = $region13
    $region12: #{tpu_custom_call.1} parent=1 // pred_region
      %s38 = ssub.s32 512, 512
      %39 = vsyncadd [#allocation7], %s38
      %s40 = sshll.u32 [#allocation8], 4
      %s41 = int_to_ptr.vmem [resolvable:$true] %s40
      %46 = dma.hbm_to_vmem [thread:$0]  %s2, 512, %s41, [#allocation7], 128, 128, 8
    $region13: #{tpu_custom_call.1} parent=1 // pred_fallthru
      _
    // Predicated region
    $region14: #{tpu_custom_call.1} parent=1 // pred_check
      _
    $region15: #{tpu_custom_call.1} parent=1 // pred_check_branch
      %48 = sbr.rel (0) target = $region17
    $region16: #{tpu_custom_call.1} parent=1 // pred_region
      %s50 = ssub.s32 9216, 9216
      %51 = vsyncadd [#allocation10], %s50
      %s52 = sshll.u32 [#allocation9], 4
      %s53 = int_to_ptr.vmem [resolvable:$true] %s52
      %58 = dma.hbm_to_vmem [thread:$0]  %s3, 9216, %s53, [#allocation10], 64, 64, 4
    $region17: #{tpu_custom_call.1} parent=1 // pred_fallthru
      _
    // Predicated region
    $region18: #{tpu_custom_call.1} parent=1 // pred_check
      _
    $region19: #{tpu_custom_call.1} parent=1 // pred_check_branch
      %60 = sbr.rel (0) target = $region21
    $region20: #{tpu_custom_call.1} parent=1 // pred_region
      %61 = dma.done [#allocation4], 128
    $region21: #{tpu_custom_call.1} parent=1 // pred_fallthru
      _
    // Predicated region
    $region22: #{tpu_custom_call.1} parent=1 // pred_check
      _
    $region23: #{tpu_custom_call.1} parent=1 // pred_check_branch
      %63 = sbr.rel (0) target = $region25
    $region24: #{tpu_custom_call.1} parent=1 // pred_region
      %64 = dma.done [#allocation7], 256
    $region25: #{tpu_custom_call.1} parent=1 // pred_fallthru
      _
    // Predicated region
    $region26: #{tpu_custom_call.1} parent=1 // pred_check
      _
    $region27: #{tpu_custom_call.1} parent=1 // pred_check_branch
      %66 = sbr.rel (0) target = $region29
    $region28: #{tpu_custom_call.1} parent=1 // pred_region
      %67 = dma.done [#allocation7], 512
    $region29: #{tpu_custom_call.1} parent=1 // pred_fallthru
      _
    // Predicated region
    $region30: #{tpu_custom_call.1} parent=1 // pred_check
      _
    $region31: #{tpu_custom_call.1} parent=1 // pred_check_branch
      %69 = sbr.rel (0) target = $region33
    $region32: #{tpu_custom_call.1} parent=1 // pred_region
      %70 = dma.done [#allocation10], 9216
    $region33: #{tpu_custom_call.1} parent=1 // pred_fallthru
      _
    %p72 = scmp.eq.s32.totalorder 0, 0
    // Predicated region
    $region34: #{tpu_custom_call.1} parent=1 // pred_check
      %p73 = pneg %p72
    $region35: #{tpu_custom_call.1} parent=1 // pred_check_branch
      %75 = sbr.rel (%p73) target = $region37
    $region36: #{tpu_custom_call.1} parent=1 // pred_region
      %76 = vst [vmem:[#allocation11] sm:$0xff] 0.0
    $region37: #{tpu_custom_call.1} parent=1 // pred_fallthru
      _
    %p77 = scmp.eq.s32.totalorder 0, 0
    // Predicated region
    $region38: #{tpu_custom_call.1} parent=1 // pred_check
      %p78 = pneg %p77
    $region39: #{tpu_custom_call.1} parent=1 // pred_check_branch
      %80 = sbr.rel (%p78) target = $region41
    $region40: #{tpu_custom_call.1} parent=1 // pred_region
      %v81 = vld [vmem:[#allocation3] sm:$0xff]
      %v82 = vsub.f32 0.0, %v81
      %v83 = vmul.f32 %v82, 1.442695
      %v84 = vpow.pop %v83
      %v85 = vadd.f32 %v84, 1.0
      %v86 = vrcp.pop %v85
      %v87 = vmul.f32 %v81, %v86
      %v88 = vpack.c.bf16 %v87, %v87
      %v89 = vld [vmem:[#allocation11] sm:$0xff]
      %v90 = vld [vmem:[#allocation9] sm:$0xf]
      %v91 = vld [vmem:[#allocation9 + $0x4] sm:$0xf]
      %v92 = vld [vmem:[#allocation9 + $0x8] sm:$0xf]
      %v93 = vld [vmem:[#allocation9 + $0xc] sm:$0xf]
      %v94 = vld [vmem:[#allocation9 + $0x10] sm:$0xf]
      %v95 = vld [vmem:[#allocation9 + $0x14] sm:$0xf]
      %v96 = vld [vmem:[#allocation9 + $0x18] sm:$0xf]
      %v97 = vld [vmem:[#allocation9 + $0x1c] sm:$0xf]
      %v98 = vld [vmem:[#allocation9 + $0x20] sm:$0xf]
      %v99 = vld [vmem:[#allocation9 + $0x24] sm:$0xf]
      %v100 = vld [vmem:[#allocation9 + $0x28] sm:$0xf]
      %v101 = vld [vmem:[#allocation9 + $0x2c] sm:$0xf]
      %v102 = vld [vmem:[#allocation9 + $0x30] sm:$0xf]
      %v103 = vld [vmem:[#allocation9 + $0x34] sm:$0xf]
      %v104 = vld [vmem:[#allocation9 + $0x38] sm:$0xf]
      %v105 = vld [vmem:[#allocation9 + $0x3c] sm:$0xf]
      %v122 = vunpack.c.l.b16 %v90
      %v123 = vunpack.c.l.b16 %v91
      %v124 = vunpack.c.l.b16 %v92
      %v125 = vunpack.c.l.b16 %v93
      %v126 = vunpack.c.l.b16 %v94
      %v127 = vunpack.c.l.b16 %v95
      %v128 = vunpack.c.l.b16 %v96
      %v129 = vunpack.c.l.b16 %v97
      %v130 = vunpack.c.l.b16 %v98
      %v131 = vunpack.c.l.b16 %v99
      %v132 = vunpack.c.l.b16 %v100
      %v133 = vunpack.c.l.b16 %v101
      %v134 = vunpack.c.l.b16 %v102
      %v135 = vunpack.c.l.b16 %v103
      %v136 = vunpack.c.l.b16 %v104
      %v137 = vunpack.c.l.b16 %v105
      %v138 = vpack.c.b16 %v123, %v122
      %v139 = vpack.c.b16 %v125, %v124
      %v140 = vpack.c.b16 %v127, %v126
      %v141 = vpack.c.b16 %v129, %v128
      %v142 = vpack.c.b16 %v131, %v130
      %v143 = vpack.c.b16 %v133, %v132
      %v144 = vpack.c.b16 %v135, %v134
      %v145 = vpack.c.b16 %v137, %v136
      %154 = vmatprep.subr.bf16.mxu0 0
      %155 = vmatpush1.bf16.msra.mxu0 %v145
      %156 = vmatprep.subr.bf16.mxu0 0
      %157 = vmatpush1.bf16.msra.mxu0 %v144
      %158 = vmatprep.subr.bf16.mxu0 0
      %159 = vmatpush1.bf16.msra.mxu0 %v143
      %160 = vmatprep.subr.bf16.mxu0 0
      %161 = vmatpush1.bf16.msra.mxu0 %v142
      %162 = vmatprep.subr.bf16.mxu0 0
      %163 = vmatpush1.bf16.msra.mxu0 %v141
      %164 = vmatprep.subr.bf16.mxu0 0
      %165 = vmatpush1.bf16.msra.mxu0 %v140
      %166 = vmatprep.subr.bf16.mxu0 0
      %167 = vmatpush1.bf16.msra.mxu0 %v139
      %168 = vmatprep.subr.bf16.mxu0 0
      %169 = vmatpush1.bf16.msra.mxu0 %v138
      %170 = vmatprep.subr.bf16.mxu0 0
      %171 = vmatpush2.bf16.msra.mxu0 0
      %172 = vmatprep.subr.bf16.mxu0 0
      %173 = vmatpush2.bf16.msra.mxu0 0
      %174 = vmatprep.subr.bf16.mxu0 0
      %175 = vmatpush2.bf16.msra.mxu0 0
      %176 = vmatprep.subr.bf16.mxu0 0
      %177 = vmatpush2.bf16.msra.mxu0 0
      %178 = vmatprep.subr.bf16.mxu0 0
      %179 = vmatpush2.bf16.msra.mxu0 0
      %180 = vmatprep.subr.bf16.mxu0 0
      %181 = vmatpush2.bf16.msra.mxu0 0
      %182 = vmatprep.subr.bf16.mxu0 0
      %183 = vmatpush2.bf16.msra.mxu0 0
      %184 = vmatprep.subr.bf16.mxu0 0
      %185 = vmatpush2.bf16.msra.mxu0 0
      %186 = vmatprep.mubr.bf16.mxu0 0
      %187 = vmatmul.mubr.bf16.gmra.mxu0 %v88
      %v188 = vpop.f32.mrf.mxu0
      %v189 = vadd.f32 0.0, %v188
      %v190 = vpop.f32.mrf.mxu0
      %v191 = vpop.f32.mrf.mxu0
      %v192 = vpop.f32.mrf.mxu0
      %193 = vdwg.mxu0
      %v194 = vadd.f32 %v89, %v189
      %195 = vst [vmem:[#allocation11] sm:$0xff] %v194
      %v196 = vld [vmem:[#allocation6] sm:$0x1]
      %v197 = vld [vmem:[#allocation6 + $0x1] sm:$0x1]
      %v198 = vld [vmem:[#allocation6 + $0x2] sm:$0x1]
      %v199 = vld [vmem:[#allocation6 + $0x3] sm:$0x1]
      %v200 = vld [vmem:[#allocation6 + $0x4] sm:$0x1]
      %v201 = vld [vmem:[#allocation6 + $0x5] sm:$0x1]
      %v202 = vld [vmem:[#allocation6 + $0x6] sm:$0x1]
      %v203 = vld [vmem:[#allocation6 + $0x7] sm:$0x1]
      %v204 = vld [vmem:[#allocation6 + $0x8] sm:$0x1]
      %v205 = vld [vmem:[#allocation6 + $0x9] sm:$0x1]
      %v206 = vld [vmem:[#allocation6 + $0xa] sm:$0x1]
      %v207 = vld [vmem:[#allocation6 + $0xb] sm:$0x1]
      %v208 = vlaneseq
      %v209 = vshrl.u32 %v208, 7
      %v210 = vsub.s32 0, %v209
      %v211 = vrot.slane %v196, %v210
      %vm212 = vcmp.ge.f32.partialorder %v81, %v211
      %v213 = vsel %vm212, 1, 0
      %v214 = vcvt.s32.f32 %v213
      %v215 = vlaneseq
      %v216 = vshrl.u32 %v215, 7
      %v217 = vsub.s32 0, %v216
      %v218 = vrot.slane %v197, %v217
      %vm219 = vcmp.ge.f32.partialorder %v81, %v218
      %v220 = vsel %vm219, 1, 0
      %v221 = vcvt.s32.f32 %v220
      %v222 = vlaneseq
      %v223 = vshrl.u32 %v222, 7
      %v224 = vsub.s32 0, %v223
      %v225 = vrot.slane %v198, %v224
      %vm226 = vcmp.ge.f32.partialorder %v81, %v225
      %v227 = vsel %vm226, 1, 0
      %v228 = vcvt.s32.f32 %v227
      %v229 = vlaneseq
      %v230 = vshrl.u32 %v229, 7
      %v231 = vsub.s32 0, %v230
      %v232 = vrot.slane %v199, %v231
      %vm233 = vcmp.ge.f32.partialorder %v81, %v232
      %v234 = vsel %vm233, 1, 0
      %v235 = vcvt.s32.f32 %v234
      %v236 = vlaneseq
      %v237 = vshrl.u32 %v236, 7
      %v238 = vsub.s32 0, %v237
      %v239 = vrot.slane %v200, %v238
      %vm240 = vcmp.ge.f32.partialorder %v81, %v239
      %v241 = vsel %vm240, 1, 0
      %v242 = vcvt.s32.f32 %v241
      %v243 = vlaneseq
      %v244 = vshrl.u32 %v243, 7
      %v245 = vsub.s32 0, %v244
      %v246 = vrot.slane %v201, %v245
      %vm247 = vcmp.ge.f32.partialorder %v81, %v246
      %v248 = vsel %vm247, 1, 0
      %v249 = vcvt.s32.f32 %v248
      %v250 = vlaneseq
      %v251 = vshrl.u32 %v250, 7
      %v252 = vsub.s32 0, %v251
      %v253 = vrot.slane %v202, %v252
      %vm254 = vcmp.ge.f32.partialorder %v81, %v253
      %v255 = vsel %vm254, 1, 0
      %v256 = vcvt.s32.f32 %v255
      %v257 = vlaneseq
      %v258 = vshrl.u32 %v257, 7
      %v259 = vsub.s32 0, %v258
      %v260 = vrot.slane %v203, %v259
      %vm261 = vcmp.ge.f32.partialorder %v81, %v260
      %v262 = vsel %vm261, 1, 0
      %v263 = vcvt.s32.f32 %v262
      %v264 = vlaneseq
      %v265 = vshrl.u32 %v264, 7
      %v266 = vsub.s32 0, %v265
      %v267 = vrot.slane %v204, %v266
      %vm268 = vcmp.ge.f32.partialorder %v81, %v267
      %v269 = vsel %vm268, 1, 0
      %v270 = vcvt.s32.f32 %v269
      %v271 = vlaneseq
      %v272 = vshrl.u32 %v271, 7
      %v273 = vsub.s32 0, %v272
      %v274 = vrot.slane %v205, %v273
      %vm275 = vcmp.ge.f32.partialorder %v81, %v274
      %v276 = vsel %vm275, 1, 0
      %v277 = vcvt.s32.f32 %v276
      %v278 = vlaneseq
      %v279 = vshrl.u32 %v278, 7
      %v280 = vsub.s32 0, %v279
      %v281 = vrot.slane %v206, %v280
      %vm282 = vcmp.ge.f32.partialorder %v81, %v281
      %v283 = vsel %vm282, 1, 0
      %v284 = vcvt.s32.f32 %v283
      %v285 = vlaneseq
      %v286 = vshrl.u32 %v285, 7
      %v287 = vsub.s32 0, %v286
      %v288 = vrot.slane %v207, %v287
      %vm289 = vcmp.ge.f32.partialorder %v81, %v288
      %v290 = vsel %vm289, 1, 0
      %v291 = vcvt.s32.f32 %v290
      %v292 = vsub.f32 %v214, %v221
      %v293 = vsub.f32 %v221, %v228
      %v294 = vsub.f32 %v228, %v235
      %v295 = vsub.f32 %v235, %v242
      %v296 = vsub.f32 %v242, %v249
      %v297 = vsub.f32 %v249, %v256
      %v298 = vsub.f32 %v256, %v263
      %v299 = vsub.f32 %v263, %v270
      %v300 = vsub.f32 %v270, %v277
      %v301 = vsub.f32 %v277, %v284
      %v302 = vsub.f32 %v284, %v291
      %v303 = vsub.f32 %v81, %v211
      %v304 = vld [vmem:[#allocation8] sm:$0x1]
      %v305 = vlaneseq
      %v306 = vshrl.u32 %v305, 7
      %v307 = vsub.s32 0, %v306
      %v308 = vrot.slane %v304, %v307
      %v309 = vmul.f32 %v303, %v308
      %v310 = vmul.f32 %v309, %v292
      %v311 = vsub.f32 %v81, %v218
      %v312 = vld [vmem:[#allocation8 + $0x1] sm:$0x1]
      %v313 = vlaneseq
      %v314 = vshrl.u32 %v313, 7
      %v315 = vsub.s32 0, %v314
      %v316 = vrot.slane %v312, %v315
      %v317 = vmul.f32 %v311, %v316
      %v318 = vmul.f32 %v317, %v293
      %v319 = vsub.f32 %v81, %v225
      %v320 = vld [vmem:[#allocation8 + $0x2] sm:$0x1]
      %v321 = vlaneseq
      %v322 = vshrl.u32 %v321, 7
      %v323 = vsub.s32 0, %v322
      %v324 = vrot.slane %v320, %v323
      %v325 = vmul.f32 %v319, %v324
      %v326 = vmul.f32 %v325, %v294
      %v327 = vsub.f32 %v81, %v232
      %v328 = vld [vmem:[#allocation8 + $0x3] sm:$0x1]
      %v329 = vlaneseq
      %v330 = vshrl.u32 %v329, 7
      %v331 = vsub.s32 0, %v330
      %v332 = vrot.slane %v328, %v331
      %v333 = vmul.f32 %v327, %v332
      %v334 = vmul.f32 %v333, %v295
      %v335 = vsub.f32 %v81, %v239
      %v336 = vld [vmem:[#allocation8 + $0x4] sm:$0x1]
      %v337 = vlaneseq
      %v338 = vshrl.u32 %v337, 7
      %v339 = vsub.s32 0, %v338
      %v340 = vrot.slane %v336, %v339
      %v341 = vmul.f32 %v335, %v340
      %v342 = vmul.f32 %v341, %v296
      %v343 = vsub.f32 %v81, %v246
      %v344 = vld [vmem:[#allocation8 + $0x5] sm:$0x1]
      %v345 = vlaneseq
      %v346 = vshrl.u32 %v345, 7
      %v347 = vsub.s32 0, %v346
      %v348 = vrot.slane %v344, %v347
      %v349 = vmul.f32 %v343, %v348
      %v350 = vmul.f32 %v349, %v297
      %v351 = vsub.f32 %v81, %v253
      %v352 = vld [vmem:[#allocation8 + $0x6] sm:$0x1]
      %v353 = vlaneseq
      %v354 = vshrl.u32 %v353, 7
      %v355 = vsub.s32 0, %v354
      %v356 = vrot.slane %v352, %v355
      %v357 = vmul.f32 %v351, %v356
      %v358 = vmul.f32 %v357, %v298
      %v359 = vsub.f32 %v81, %v260
      %v360 = vld [vmem:[#allocation8 + $0x7] sm:$0x1]
      %v361 = vlaneseq
      %v362 = vshrl.u32 %v361, 7
      %v363 = vsub.s32 0, %v362
      %v364 = vrot.slane %v360, %v363
      %v365 = vmul.f32 %v359, %v364
      %v366 = vmul.f32 %v365, %v299
      %v367 = vsub.f32 %v81, %v267
      %v368 = vld [vmem:[#allocation8 + $0x8] sm:$0x1]
      %v369 = vlaneseq
      %v370 = vshrl.u32 %v369, 7
      %v371 = vsub.s32 0, %v370
      %v372 = vrot.slane %v368, %v371
      %v373 = vmul.f32 %v367, %v372
      %v374 = vmul.f32 %v373, %v300
      %v375 = vsub.f32 %v81, %v274
      %v376 = vld [vmem:[#allocation8 + $0x9] sm:$0x1]
      %v377 = vlaneseq
      %v378 = vshrl.u32 %v377, 7
      %v379 = vsub.s32 0, %v378
      %v380 = vrot.slane %v376, %v379
      %v381 = vmul.f32 %v375, %v380
      %v382 = vmul.f32 %v381, %v301
      %v383 = vsub.f32 %v81, %v281
      %v384 = vld [vmem:[#allocation8 + $0xa] sm:$0x1]
      %v385 = vlaneseq
      %v386 = vshrl.u32 %v385, 7
      %v387 = vsub.s32 0, %v386
      %v388 = vrot.slane %v384, %v387
      %v389 = vmul.f32 %v383, %v388
      %v390 = vmul.f32 %v389, %v302
      %v391 = vsub.f32 %v310, %v318
      %v392 = vadd.f32 %v391, %v293
      %v393 = vsub.f32 %v318, %v326
      %v394 = vadd.f32 %v393, %v294
      %v395 = vsub.f32 %v326, %v334
      %v396 = vadd.f32 %v395, %v295
      %v397 = vsub.f32 %v334, %v342
      %v398 = vadd.f32 %v397, %v296
      %v399 = vsub.f32 %v342, %v350
      %v400 = vadd.f32 %v399, %v297
      %v401 = vsub.f32 %v350, %v358
      %v402 = vadd.f32 %v401, %v298
      %v403 = vsub.f32 %v358, %v366
      %v404 = vadd.f32 %v403, %v299
      %v405 = vsub.f32 %v366, %v374
      %v406 = vadd.f32 %v405, %v300
      %v407 = vsub.f32 %v374, %v382
      %v408 = vadd.f32 %v407, %v301
      %v409 = vsub.f32 %v382, %v390
      %v410 = vadd.f32 %v409, %v302
      %v411 = vld [vmem:[#allocation8 + $0xb] sm:$0x1]
      %v412 = vlaneseq
      %v413 = vshrl.u32 %v412, 7
      %v414 = vsub.s32 0, %v413
      %v415 = vrot.slane %v411, %v414
      %v416 = vmul.f32 %v303, %v415
      %v417 = vmul.f32 %v416, %v392
      %v418 = vld [vmem:[#allocation8 + $0xc] sm:$0x1]
      %v419 = vlaneseq
      %v420 = vshrl.u32 %v419, 7
      %v421 = vsub.s32 0, %v420
      %v422 = vrot.slane %v418, %v421
      %v423 = vmul.f32 %v311, %v422
      %v424 = vmul.f32 %v423, %v394
      %v425 = vld [vmem:[#allocation8 + $0xd] sm:$0x1]
      %v426 = vlaneseq
      %v427 = vshrl.u32 %v426, 7
      %v428 = vsub.s32 0, %v427
      %v429 = vrot.slane %v425, %v428
      %v430 = vmul.f32 %v319, %v429
      %v431 = vmul.f32 %v430, %v396
      %v432 = vld [vmem:[#allocation8 + $0xe] sm:$0x1]
      %v433 = vlaneseq
      %v434 = vshrl.u32 %v433, 7
      %v435 = vsub.s32 0, %v434
      %v436 = vrot.slane %v432, %v435
      %v437 = vmul.f32 %v327, %v436
      %v438 = vmul.f32 %v437, %v398
      %v439 = vld [vmem:[#allocation8 + $0xf] sm:$0x1]
      %v440 = vlaneseq
      %v441 = vshrl.u32 %v440, 7
      %v442 = vsub.s32 0, %v441
      %v443 = vrot.slane %v439, %v442
      %v444 = vmul.f32 %v335, %v443
      %v445 = vmul.f32 %v444, %v400
      %v446 = vld [vmem:[#allocation8 + $0x10] sm:$0x1]
      %v447 = vlaneseq
      %v448 = vshrl.u32 %v447, 7
      %v449 = vsub.s32 0, %v448
      %v450 = vrot.slane %v446, %v449
      %v451 = vmul.f32 %v343, %v450
      %v452 = vmul.f32 %v451, %v402
      %v453 = vld [vmem:[#allocation8 + $0x11] sm:$0x1]
      %v454 = vlaneseq
      %v455 = vshrl.u32 %v454, 7
      %v456 = vsub.s32 0, %v455
      %v457 = vrot.slane %v453, %v456
      %v458 = vmul.f32 %v351, %v457
      %v459 = vmul.f32 %v458, %v404
      %v460 = vld [vmem:[#allocation8 + $0x12] sm:$0x1]
      %v461 = vlaneseq
      %v462 = vshrl.u32 %v461, 7
      %v463 = vsub.s32 0, %v462
      %v464 = vrot.slane %v460, %v463
      %v465 = vmul.f32 %v359, %v464
      %v466 = vmul.f32 %v465, %v406
      %v467 = vld [vmem:[#allocation8 + $0x13] sm:$0x1]
      %v468 = vlaneseq
      %v469 = vshrl.u32 %v468, 7
      %v470 = vsub.s32 0, %v469
      %v471 = vrot.slane %v467, %v470
      %v472 = vmul.f32 %v367, %v471
      %v473 = vmul.f32 %v472, %v408
      %v474 = vld [vmem:[#allocation8 + $0x14] sm:$0x1]
      %v475 = vlaneseq
      %v476 = vshrl.u32 %v475, 7
      %v477 = vsub.s32 0, %v476
      %v478 = vrot.slane %v474, %v477
      %v479 = vmul.f32 %v375, %v478
      %v480 = vmul.f32 %v479, %v410
      %v481 = vsub.f32 %v417, %v424
      %v482 = vadd.f32 %v481, %v394
      %v483 = vsub.f32 %v424, %v431
      %v484 = vadd.f32 %v483, %v396
      %v485 = vsub.f32 %v431, %v438
      %v486 = vadd.f32 %v485, %v398
      %v487 = vsub.f32 %v438, %v445
      %v488 = vadd.f32 %v487, %v400
      %v489 = vsub.f32 %v445, %v452
      %v490 = vadd.f32 %v489, %v402
      %v491 = vsub.f32 %v452, %v459
      %v492 = vadd.f32 %v491, %v404
      %v493 = vsub.f32 %v459, %v466
      %v494 = vadd.f32 %v493, %v406
      %v495 = vsub.f32 %v466, %v473
      %v496 = vadd.f32 %v495, %v408
      %v497 = vsub.f32 %v473, %v480
      %v498 = vadd.f32 %v497, %v410
      %v499 = vld [vmem:[#allocation8 + $0x15] sm:$0x1]
      %v500 = vlaneseq
      %v501 = vshrl.u32 %v500, 7
      %v502 = vsub.s32 0, %v501
      %v503 = vrot.slane %v499, %v502
      %v504 = vmul.f32 %v303, %v503
      %v505 = vmul.f32 %v504, %v482
      %v506 = vld [vmem:[#allocation8 + $0x16] sm:$0x1]
      %v507 = vlaneseq
      %v508 = vshrl.u32 %v507, 7
      %v509 = vsub.s32 0, %v508
      %v510 = vrot.slane %v506, %v509
      %v511 = vmul.f32 %v311, %v510
      %v512 = vmul.f32 %v511, %v484
      %v513 = vld [vmem:[#allocation8 + $0x17] sm:$0x1]
      %v514 = vlaneseq
      %v515 = vshrl.u32 %v514, 7
      %v516 = vsub.s32 0, %v515
      %v517 = vrot.slane %v513, %v516
      %v518 = vmul.f32 %v319, %v517
      %v519 = vmul.f32 %v518, %v486
      %v520 = vld [vmem:[#allocation8 + $0x18] sm:$0x1]
      %v521 = vlaneseq
      %v522 = vshrl.u32 %v521, 7
      %v523 = vsub.s32 0, %v522
      %v524 = vrot.slane %v520, %v523
      %v525 = vmul.f32 %v327, %v524
      %v526 = vmul.f32 %v525, %v488
      %v527 = vld [vmem:[#allocation8 + $0x19] sm:$0x1]
      %v528 = vlaneseq
      %v529 = vshrl.u32 %v528, 7
      %v530 = vsub.s32 0, %v529
      %v531 = vrot.slane %v527, %v530
      %v532 = vmul.f32 %v335, %v531
      %v533 = vmul.f32 %v532, %v490
      %v534 = vld [vmem:[#allocation8 + $0x1a] sm:$0x1]
      %v535 = vlaneseq
      %v536 = vshrl.u32 %v535, 7
      %v537 = vsub.s32 0, %v536
      %v538 = vrot.slane %v534, %v537
      %v539 = vmul.f32 %v343, %v538
      %v540 = vmul.f32 %v539, %v492
      %v541 = vld [vmem:[#allocation8 + $0x1b] sm:$0x1]
      %v542 = vlaneseq
      %v543 = vshrl.u32 %v542, 7
      %v544 = vsub.s32 0, %v543
      %v545 = vrot.slane %v541, %v544
      %v546 = vmul.f32 %v351, %v545
      %v547 = vmul.f32 %v546, %v494
      %v548 = vld [vmem:[#allocation8 + $0x1c] sm:$0x1]
      %v549 = vlaneseq
      %v550 = vshrl.u32 %v549, 7
      %v551 = vsub.s32 0, %v550
      %v552 = vrot.slane %v548, %v551
      %v553 = vmul.f32 %v359, %v552
      %v554 = vmul.f32 %v553, %v496
      %v555 = vld [vmem:[#allocation8 + $0x1d] sm:$0x1]
      %v556 = vlaneseq
      %v557 = vshrl.u32 %v556, 7
      %v558 = vsub.s32 0, %v557
      %v559 = vrot.slane %v555, %v558
      %v560 = vmul.f32 %v367, %v559
      %v561 = vmul.f32 %v560, %v498
      %v562 = vsub.f32 %v505, %v512
      %v563 = vadd.f32 %v562, %v484
      %v564 = vpack.c.bf16 %v563, %v563
      %v565 = vld [vmem:[#allocation11] sm:$0xff]
      %v566 = vld [vmem:[#allocation9 + $0x40] sm:$0xf]
      %v567 = vld [vmem:[#allocation9 + $0x44] sm:$0xf]
      %v568 = vld [vmem:[#allocation9 + $0x48] sm:$0xf]
      %v569 = vld [vmem:[#allocation9 + $0x4c] sm:$0xf]
      %v570 = vld [vmem:[#allocation9 + $0x50] sm:$0xf]
      %v571 = vld [vmem:[#allocation9 + $0x54] sm:$0xf]
      %v572 = vld [vmem:[#allocation9 + $0x58] sm:$0xf]
      %v573 = vld [vmem:[#allocation9 + $0x5c] sm:$0xf]
      %v574 = vld [vmem:[#allocation9 + $0x60] sm:$0xf]
      %v575 = vld [vmem:[#allocation9 + $0x64] sm:$0xf]
      %v576 = vld [vmem:[#allocation9 + $0x68] sm:$0xf]
      %v577 = vld [vmem:[#allocation9 + $0x6c] sm:$0xf]
      %v578 = vld [vmem:[#allocation9 + $0x70] sm:$0xf]
      %v579 = vld [vmem:[#allocation9 + $0x74] sm:$0xf]
      %v580 = vld [vmem:[#allocation9 + $0x78] sm:$0xf]
      %v581 = vld [vmem:[#allocation9 + $0x7c] sm:$0xf]
      %v598 = vunpack.c.l.b16 %v566
      %v599 = vunpack.c.l.b16 %v567
      %v600 = vunpack.c.l.b16 %v568
      %v601 = vunpack.c.l.b16 %v569
      %v602 = vunpack.c.l.b16 %v570
      %v603 = vunpack.c.l.b16 %v571
      %v604 = vunpack.c.l.b16 %v572
      %v605 = vunpack.c.l.b16 %v573
      %v606 = vunpack.c.l.b16 %v574
      %v607 = vunpack.c.l.b16 %v575
      %v608 = vunpack.c.l.b16 %v576
      %v609 = vunpack.c.l.b16 %v577
      %v610 = vunpack.c.l.b16 %v578
      %v611 = vunpack.c.l.b16 %v579
      %v612 = vunpack.c.l.b16 %v580
      %v613 = vunpack.c.l.b16 %v581
      %v614 = vpack.c.b16 %v599, %v598
      %v615 = vpack.c.b16 %v601, %v600
      %v616 = vpack.c.b16 %v603, %v602
      %v617 = vpack.c.b16 %v605, %v604
      %v618 = vpack.c.b16 %v607, %v606
      %v619 = vpack.c.b16 %v609, %v608
      %v620 = vpack.c.b16 %v611, %v610
      %v621 = vpack.c.b16 %v613, %v612
      %630 = vmatprep.subr.bf16.mxu0 0
      %631 = vmatpush1.bf16.msra.mxu0 %v621
      %632 = vmatprep.subr.bf16.mxu0 0
      %633 = vmatpush1.bf16.msra.mxu0 %v620
      %634 = vmatprep.subr.bf16.mxu0 0
      %635 = vmatpush1.bf16.msra.mxu0 %v619
      %636 = vmatprep.subr.bf16.mxu0 0
      %637 = vmatpush1.bf16.msra.mxu0 %v618
      %638 = vmatprep.subr.bf16.mxu0 0
      %639 = vmatpush1.bf16.msra.mxu0 %v617
      %640 = vmatprep.subr.bf16.mxu0 0
      %641 = vmatpush1.bf16.msra.mxu0 %v616
      %642 = vmatprep.subr.bf16.mxu0 0
      %643 = vmatpush1.bf16.msra.mxu0 %v615
      %644 = vmatprep.subr.bf16.mxu0 0
      %645 = vmatpush1.bf16.msra.mxu0 %v614
      %646 = vmatprep.subr.bf16.mxu0 0
      %647 = vmatpush2.bf16.msra.mxu0 0
      %648 = vmatprep.subr.bf16.mxu0 0
      %649 = vmatpush2.bf16.msra.mxu0 0
      %650 = vmatprep.subr.bf16.mxu0 0
      %651 = vmatpush2.bf16.msra.mxu0 0
      %652 = vmatprep.subr.bf16.mxu0 0
      %653 = vmatpush2.bf16.msra.mxu0 0
      %654 = vmatprep.subr.bf16.mxu0 0
      %655 = vmatpush2.bf16.msra.mxu0 0
      %656 = vmatprep.subr.bf16.mxu0 0
      %657 = vmatpush2.bf16.msra.mxu0 0
      %658 = vmatprep.subr.bf16.mxu0 0
      %659 = vmatpush2.bf16.msra.mxu0 0
      %660 = vmatprep.subr.bf16.mxu0 0
      %661 = vmatpush2.bf16.msra.mxu0 0
      %662 = vmatprep.mubr.bf16.mxu0 0
      %663 = vmatmul.mubr.bf16.gmra.mxu0 %v564
      %v664 = vpop.f32.mrf.mxu0
      %v665 = vadd.f32 0.0, %v664
      %v666 = vpop.f32.mrf.mxu0
      %v667 = vpop.f32.mrf.mxu0
      %v668 = vpop.f32.mrf.mxu0
      %669 = vdwg.mxu0
      %v670 = vadd.f32 %v565, %v665
      %671 = vst [vmem:[#allocation11] sm:$0xff] %v670
      %v672 = vsub.f32 %v512, %v519
      %v673 = vadd.f32 %v672, %v486
      %v674 = vpack.c.bf16 %v673, %v673
      %v675 = vld [vmem:[#allocation11] sm:$0xff]
      %v676 = vld [vmem:[#allocation9 + $0x80] sm:$0xf]
      %v677 = vld [vmem:[#allocation9 + $0x84] sm:$0xf]
      %v678 = vld [vmem:[#allocation9 + $0x88] sm:$0xf]
      %v679 = vld [vmem:[#allocation9 + $0x8c] sm:$0xf]
      %v680 = vld [vmem:[#allocation9 + $0x90] sm:$0xf]
      %v681 = vld [vmem:[#allocation9 + $0x94] sm:$0xf]
      %v682 = vld [vmem:[#allocation9 + $0x98] sm:$0xf]
      %v683 = vld [vmem:[#allocation9 + $0x9c] sm:$0xf]
      %v684 = vld [vmem:[#allocation9 + $0xa0] sm:$0xf]
      %v685 = vld [vmem:[#allocation9 + $0xa4] sm:$0xf]
      %v686 = vld [vmem:[#allocation9 + $0xa8] sm:$0xf]
      %v687 = vld [vmem:[#allocation9 + $0xac] sm:$0xf]
      %v688 = vld [vmem:[#allocation9 + $0xb0] sm:$0xf]
      %v689 = vld [vmem:[#allocation9 + $0xb4] sm:$0xf]
      %v690 = vld [vmem:[#allocation9 + $0xb8] sm:$0xf]
      %v691 = vld [vmem:[#allocation9 + $0xbc] sm:$0xf]
      %v708 = vunpack.c.l.b16 %v676
      %v709 = vunpack.c.l.b16 %v677
      %v710 = vunpack.c.l.b16 %v678
      %v711 = vunpack.c.l.b16 %v679
      %v712 = vunpack.c.l.b16 %v680
      %v713 = vunpack.c.l.b16 %v681
      %v714 = vunpack.c.l.b16 %v682
      %v715 = vunpack.c.l.b16 %v683
      %v716 = vunpack.c.l.b16 %v684
      %v717 = vunpack.c.l.b16 %v685
      %v718 = vunpack.c.l.b16 %v686
      %v719 = vunpack.c.l.b16 %v687
      %v720 = vunpack.c.l.b16 %v688
      %v721 = vunpack.c.l.b16 %v689
      %v722 = vunpack.c.l.b16 %v690
      %v723 = vunpack.c.l.b16 %v691
      %v724 = vpack.c.b16 %v709, %v708
      %v725 = vpack.c.b16 %v711, %v710
      %v726 = vpack.c.b16 %v713, %v712
      %v727 = vpack.c.b16 %v715, %v714
      %v728 = vpack.c.b16 %v717, %v716
      %v729 = vpack.c.b16 %v719, %v718
      %v730 = vpack.c.b16 %v721, %v720
      %v731 = vpack.c.b16 %v723, %v722
      %740 = vmatprep.subr.bf16.mxu0 0
      %741 = vmatpush1.bf16.msra.mxu0 %v731
      %742 = vmatprep.subr.bf16.mxu0 0
      %743 = vmatpush1.bf16.msra.mxu0 %v730
      %744 = vmatprep.subr.bf16.mxu0 0
      %745 = vmatpush1.bf16.msra.mxu0 %v729
      %746 = vmatprep.subr.bf16.mxu0 0
      %747 = vmatpush1.bf16.msra.mxu0 %v728
      %748 = vmatprep.subr.bf16.mxu0 0
      %749 = vmatpush1.bf16.msra.mxu0 %v727
      %750 = vmatprep.subr.bf16.mxu0 0
      %751 = vmatpush1.bf16.msra.mxu0 %v726
      %752 = vmatprep.subr.bf16.mxu0 0
      %753 = vmatpush1.bf16.msra.mxu0 %v725
      %754 = vmatprep.subr.bf16.mxu0 0
      %755 = vmatpush1.bf16.msra.mxu0 %v724
      %756 = vmatprep.subr.bf16.mxu0 0
      %757 = vmatpush2.bf16.msra.mxu0 0
      %758 = vmatprep.subr.bf16.mxu0 0
      %759 = vmatpush2.bf16.msra.mxu0 0
      %760 = vmatprep.subr.bf16.mxu0 0
      %761 = vmatpush2.bf16.msra.mxu0 0
      %762 = vmatprep.subr.bf16.mxu0 0
      %763 = vmatpush2.bf16.msra.mxu0 0
      %764 = vmatprep.subr.bf16.mxu0 0
      %765 = vmatpush2.bf16.msra.mxu0 0
      %766 = vmatprep.subr.bf16.mxu0 0
      %767 = vmatpush2.bf16.msra.mxu0 0
      %768 = vmatprep.subr.bf16.mxu0 0
      %769 = vmatpush2.bf16.msra.mxu0 0
      %770 = vmatprep.subr.bf16.mxu0 0
      %771 = vmatpush2.bf16.msra.mxu0 0
      %772 = vmatprep.mubr.bf16.mxu0 0
      %773 = vmatmul.mubr.bf16.gmra.mxu0 %v674
      %v774 = vpop.f32.mrf.mxu0
      %v775 = vadd.f32 0.0, %v774
      %v776 = vpop.f32.mrf.mxu0
      %v777 = vpop.f32.mrf.mxu0
      %v778 = vpop.f32.mrf.mxu0
      %779 = vdwg.mxu0
      %v780 = vadd.f32 %v675, %v775
      %781 = vst [vmem:[#allocation11] sm:$0xff] %v780
      %v782 = vsub.f32 %v519, %v526
      %v783 = vadd.f32 %v782, %v488
      %v784 = vpack.c.bf16 %v783, %v783
      %v785 = vld [vmem:[#allocation11] sm:$0xff]
      %v786 = vld [vmem:[#allocation9 + $0xc0] sm:$0xf]
      %v787 = vld [vmem:[#allocation9 + $0xc4] sm:$0xf]
      %v788 = vld [vmem:[#allocation9 + $0xc8] sm:$0xf]
      %v789 = vld [vmem:[#allocation9 + $0xcc] sm:$0xf]
      %v790 = vld [vmem:[#allocation9 + $0xd0] sm:$0xf]
      %v791 = vld [vmem:[#allocation9 + $0xd4] sm:$0xf]
      %v792 = vld [vmem:[#allocation9 + $0xd8] sm:$0xf]
      %v793 = vld [vmem:[#allocation9 + $0xdc] sm:$0xf]
      %v794 = vld [vmem:[#allocation9 + $0xe0] sm:$0xf]
      %v795 = vld [vmem:[#allocation9 + $0xe4] sm:$0xf]
      %v796 = vld [vmem:[#allocation9 + $0xe8] sm:$0xf]
      %v797 = vld [vmem:[#allocation9 + $0xec] sm:$0xf]
      %v798 = vld [vmem:[#allocation9 + $0xf0] sm:$0xf]
      %v799 = vld [vmem:[#allocation9 + $0xf4] sm:$0xf]
      %v800 = vld [vmem:[#allocation9 + $0xf8] sm:$0xf]
      %v801 = vld [vmem:[#allocation9 + $0xfc] sm:$0xf]
      %v818 = vunpack.c.l.b16 %v786
      %v819 = vunpack.c.l.b16 %v787
      %v820 = vunpack.c.l.b16 %v788
      %v821 = vunpack.c.l.b16 %v789
      %v822 = vunpack.c.l.b16 %v790
      %v823 = vunpack.c.l.b16 %v791
      %v824 = vunpack.c.l.b16 %v792
      %v825 = vunpack.c.l.b16 %v793
      %v826 = vunpack.c.l.b16 %v794
      %v827 = vunpack.c.l.b16 %v795
      %v828 = vunpack.c.l.b16 %v796
      %v829 = vunpack.c.l.b16 %v797
      %v830 = vunpack.c.l.b16 %v798
      %v831 = vunpack.c.l.b16 %v799
      %v832 = vunpack.c.l.b16 %v800
      %v833 = vunpack.c.l.b16 %v801
      %v834 = vpack.c.b16 %v819, %v818
      %v835 = vpack.c.b16 %v821, %v820
      %v836 = vpack.c.b16 %v823, %v822
      %v837 = vpack.c.b16 %v825, %v824
      %v838 = vpack.c.b16 %v827, %v826
      %v839 = vpack.c.b16 %v829, %v828
      %v840 = vpack.c.b16 %v831, %v830
      %v841 = vpack.c.b16 %v833, %v832
      %850 = vmatprep.subr.bf16.mxu0 0
      %851 = vmatpush1.bf16.msra.mxu0 %v841
      %852 = vmatprep.subr.bf16.mxu0 0
      %853 = vmatpush1.bf16.msra.mxu0 %v840
      %854 = vmatprep.subr.bf16.mxu0 0
      %855 = vmatpush1.bf16.msra.mxu0 %v839
      %856 = vmatprep.subr.bf16.mxu0 0
      %857 = vmatpush1.bf16.msra.mxu0 %v838
      %858 = vmatprep.subr.bf16.mxu0 0
      %859 = vmatpush1.bf16.msra.mxu0 %v837
      %860 = vmatprep.subr.bf16.mxu0 0
      %861 = vmatpush1.bf16.msra.mxu0 %v836
      %862 = vmatprep.subr.bf16.mxu0 0
      %863 = vmatpush1.bf16.msra.mxu0 %v835
      %864 = vmatprep.subr.bf16.mxu0 0
      %865 = vmatpush1.bf16.msra.mxu0 %v834
      %866 = vmatprep.subr.bf16.mxu0 0
      %867 = vmatpush2.bf16.msra.mxu0 0
      %868 = vmatprep.subr.bf16.mxu0 0
      %869 = vmatpush2.bf16.msra.mxu0 0
      %870 = vmatprep.subr.bf16.mxu0 0
      %871 = vmatpush2.bf16.msra.mxu0 0
      %872 = vmatprep.subr.bf16.mxu0 0
      %873 = vmatpush2.bf16.msra.mxu0 0
      %874 = vmatprep.subr.bf16.mxu0 0
      %875 = vmatpush2.bf16.msra.mxu0 0
      %876 = vmatprep.subr.bf16.mxu0 0
      %877 = vmatpush2.bf16.msra.mxu0 0
      %878 = vmatprep.subr.bf16.mxu0 0
      %879 = vmatpush2.bf16.msra.mxu0 0
      %880 = vmatprep.subr.bf16.mxu0 0
      %881 = vmatpush2.bf16.msra.mxu0 0
      %882 = vmatprep.mubr.bf16.mxu0 0
      %883 = vmatmul.mubr.bf16.gmra.mxu0 %v784
      %v884 = vpop.f32.mrf.mxu0
      %v885 = vadd.f32 0.0, %v884
      %v886 = vpop.f32.mrf.mxu0
      %v887 = vpop.f32.mrf.mxu0
      %v888 = vpop.f32.mrf.mxu0
      %889 = vdwg.mxu0
      %v890 = vadd.f32 %v785, %v885
      %891 = vst [vmem:[#allocation11] sm:$0xff] %v890
      %v892 = vsub.f32 %v526, %v533
      %v893 = vadd.f32 %v892, %v490
      %v894 = vpack.c.bf16 %v893, %v893
      %v895 = vld [vmem:[#allocation11] sm:$0xff]
      %v896 = vld [vmem:[#allocation9 + $0x100] sm:$0xf]
      %v897 = vld [vmem:[#allocation9 + $0x104] sm:$0xf]
      %v898 = vld [vmem:[#allocation9 + $0x108] sm:$0xf]
      %v899 = vld [vmem:[#allocation9 + $0x10c] sm:$0xf]
      %v900 = vld [vmem:[#allocation9 + $0x110] sm:$0xf]
      %v901 = vld [vmem:[#allocation9 + $0x114] sm:$0xf]
      %v902 = vld [vmem:[#allocation9 + $0x118] sm:$0xf]
      %v903 = vld [vmem:[#allocation9 + $0x11c] sm:$0xf]
      %v904 = vld [vmem:[#allocation9 + $0x120] sm:$0xf]
      %v905 = vld [vmem:[#allocation9 + $0x124] sm:$0xf]
      %v906 = vld [vmem:[#allocation9 + $0x128] sm:$0xf]
      %v907 = vld [vmem:[#allocation9 + $0x12c] sm:$0xf]
      %v908 = vld [vmem:[#allocation9 + $0x130] sm:$0xf]
      %v909 = vld [vmem:[#allocation9 + $0x134] sm:$0xf]
      %v910 = vld [vmem:[#allocation9 + $0x138] sm:$0xf]
      %v911 = vld [vmem:[#allocation9 + $0x13c] sm:$0xf]
      %v928 = vunpack.c.l.b16 %v896
      %v929 = vunpack.c.l.b16 %v897
      %v930 = vunpack.c.l.b16 %v898
      %v931 = vunpack.c.l.b16 %v899
      %v932 = vunpack.c.l.b16 %v900
      %v933 = vunpack.c.l.b16 %v901
      %v934 = vunpack.c.l.b16 %v902
      %v935 = vunpack.c.l.b16 %v903
      %v936 = vunpack.c.l.b16 %v904
      %v937 = vunpack.c.l.b16 %v905
      %v938 = vunpack.c.l.b16 %v906
      %v939 = vunpack.c.l.b16 %v907
      %v940 = vunpack.c.l.b16 %v908
      %v941 = vunpack.c.l.b16 %v909
      %v942 = vunpack.c.l.b16 %v910
      %v943 = vunpack.c.l.b16 %v911
      %v944 = vpack.c.b16 %v929, %v928
      %v945 = vpack.c.b16 %v931, %v930
      %v946 = vpack.c.b16 %v933, %v932
      %v947 = vpack.c.b16 %v935, %v934
      %v948 = vpack.c.b16 %v937, %v936
      %v949 = vpack.c.b16 %v939, %v938
      %v950 = vpack.c.b16 %v941, %v940
      %v951 = vpack.c.b16 %v943, %v942
      %960 = vmatprep.subr.bf16.mxu0 0
      %961 = vmatpush1.bf16.msra.mxu0 %v951
      %962 = vmatprep.subr.bf16.mxu0 0
      %963 = vmatpush1.bf16.msra.mxu0 %v950
      %964 = vmatprep.subr.bf16.mxu0 0
      %965 = vmatpush1.bf16.msra.mxu0 %v949
      %966 = vmatprep.subr.bf16.mxu0 0
      %967 = vmatpush1.bf16.msra.mxu0 %v948
      %968 = vmatprep.subr.bf16.mxu0 0
      %969 = vmatpush1.bf16.msra.mxu0 %v947
      %970 = vmatprep.subr.bf16.mxu0 0
      %971 = vmatpush1.bf16.msra.mxu0 %v946
      %972 = vmatprep.subr.bf16.mxu0 0
      %973 = vmatpush1.bf16.msra.mxu0 %v945
      %974 = vmatprep.subr.bf16.mxu0 0
      %975 = vmatpush1.bf16.msra.mxu0 %v944
      %976 = vmatprep.subr.bf16.mxu0 0
      %977 = vmatpush2.bf16.msra.mxu0 0
      %978 = vmatprep.subr.bf16.mxu0 0
      %979 = vmatpush2.bf16.msra.mxu0 0
      %980 = vmatprep.subr.bf16.mxu0 0
      %981 = vmatpush2.bf16.msra.mxu0 0
      %982 = vmatprep.subr.bf16.mxu0 0
      %983 = vmatpush2.bf16.msra.mxu0 0
      %984 = vmatprep.subr.bf16.mxu0 0
      %985 = vmatpush2.bf16.msra.mxu0 0
      %986 = vmatprep.subr.bf16.mxu0 0
      %987 = vmatpush2.bf16.msra.mxu0 0
      %988 = vmatprep.subr.bf16.mxu0 0
      %989 = vmatpush2.bf16.msra.mxu0 0
      %990 = vmatprep.subr.bf16.mxu0 0
      %991 = vmatpush2.bf16.msra.mxu0 0
      %992 = vmatprep.mubr.bf16.mxu0 0
      %993 = vmatmul.mubr.bf16.gmra.mxu0 %v894
      %v994 = vpop.f32.mrf.mxu0
      %v995 = vadd.f32 0.0, %v994
      %v996 = vpop.f32.mrf.mxu0
      %v997 = vpop.f32.mrf.mxu0
      %v998 = vpop.f32.mrf.mxu0
      %999 = vdwg.mxu0
      %v1000 = vadd.f32 %v895, %v995
      %1001 = vst [vmem:[#allocation11] sm:$0xff] %v1000
      %v1002 = vsub.f32 %v533, %v540
      %v1003 = vadd.f32 %v1002, %v492
      %v1004 = vpack.c.bf16 %v1003, %v1003
      %v1005 = vld [vmem:[#allocation11] sm:$0xff]
      %v1006 = vld [vmem:[#allocation9 + $0x140] sm:$0xf]
      %v1007 = vld [vmem:[#allocation9 + $0x144] sm:$0xf]
      %v1008 = vld [vmem:[#allocation9 + $0x148] sm:$0xf]
      %v1009 = vld [vmem:[#allocation9 + $0x14c] sm:$0xf]
      %v1010 = vld [vmem:[#allocation9 + $0x150] sm:$0xf]
      %v1011 = vld [vmem:[#allocation9 + $0x154] sm:$0xf]
      %v1012 = vld [vmem:[#allocation9 + $0x158] sm:$0xf]
      %v1013 = vld [vmem:[#allocation9 + $0x15c] sm:$0xf]
      %v1014 = vld [vmem:[#allocation9 + $0x160] sm:$0xf]
      %v1015 = vld [vmem:[#allocation9 + $0x164] sm:$0xf]
      %v1016 = vld [vmem:[#allocation9 + $0x168] sm:$0xf]
      %v1017 = vld [vmem:[#allocation9 + $0x16c] sm:$0xf]
      %v1018 = vld [vmem:[#allocation9 + $0x170] sm:$0xf]
      %v1019 = vld [vmem:[#allocation9 + $0x174] sm:$0xf]
      %v1020 = vld [vmem:[#allocation9 + $0x178] sm:$0xf]
      %v1021 = vld [vmem:[#allocation9 + $0x17c] sm:$0xf]
      %v1038 = vunpack.c.l.b16 %v1006
      %v1039 = vunpack.c.l.b16 %v1007
      %v1040 = vunpack.c.l.b16 %v1008
      %v1041 = vunpack.c.l.b16 %v1009
      %v1042 = vunpack.c.l.b16 %v1010
      %v1043 = vunpack.c.l.b16 %v1011
      %v1044 = vunpack.c.l.b16 %v1012
      %v1045 = vunpack.c.l.b16 %v1013
      %v1046 = vunpack.c.l.b16 %v1014
      %v1047 = vunpack.c.l.b16 %v1015
      %v1048 = vunpack.c.l.b16 %v1016
      %v1049 = vunpack.c.l.b16 %v1017
      %v1050 = vunpack.c.l.b16 %v1018
      %v1051 = vunpack.c.l.b16 %v1019
      %v1052 = vunpack.c.l.b16 %v1020
      %v1053 = vunpack.c.l.b16 %v1021
      %v1054 = vpack.c.b16 %v1039, %v1038
      %v1055 = vpack.c.b16 %v1041, %v1040
      %v1056 = vpack.c.b16 %v1043, %v1042
      %v1057 = vpack.c.b16 %v1045, %v1044
      %v1058 = vpack.c.b16 %v1047, %v1046
      %v1059 = vpack.c.b16 %v1049, %v1048
      %v1060 = vpack.c.b16 %v1051, %v1050
      %v1061 = vpack.c.b16 %v1053, %v1052
      %1070 = vmatprep.subr.bf16.mxu0 0
      %1071 = vmatpush1.bf16.msra.mxu0 %v1061
      %1072 = vmatprep.subr.bf16.mxu0 0
      %1073 = vmatpush1.bf16.msra.mxu0 %v1060
      %1074 = vmatprep.subr.bf16.mxu0 0
      %1075 = vmatpush1.bf16.msra.mxu0 %v1059
      %1076 = vmatprep.subr.bf16.mxu0 0
      %1077 = vmatpush1.bf16.msra.mxu0 %v1058
      %1078 = vmatprep.subr.bf16.mxu0 0
      %1079 = vmatpush1.bf16.msra.mxu0 %v1057
      %1080 = vmatprep.subr.bf16.mxu0 0
      %1081 = vmatpush1.bf16.msra.mxu0 %v1056
      %1082 = vmatprep.subr.bf16.mxu0 0
      %1083 = vmatpush1.bf16.msra.mxu0 %v1055
      %1084 = vmatprep.subr.bf16.mxu0 0
      %1085 = vmatpush1.bf16.msra.mxu0 %v1054
      %1086 = vmatprep.subr.bf16.mxu0 0
      %1087 = vmatpush2.bf16.msra.mxu0 0
      %1088 = vmatprep.subr.bf16.mxu0 0
      %1089 = vmatpush2.bf16.msra.mxu0 0
      %1090 = vmatprep.subr.bf16.mxu0 0
      %1091 = vmatpush2.bf16.msra.mxu0 0
      %1092 = vmatprep.subr.bf16.mxu0 0
      %1093 = vmatpush2.bf16.msra.mxu0 0
      %1094 = vmatprep.subr.bf16.mxu0 0
      %1095 = vmatpush2.bf16.msra.mxu0 0
      %1096 = vmatprep.subr.bf16.mxu0 0
      %1097 = vmatpush2.bf16.msra.mxu0 0
      %1098 = vmatprep.subr.bf16.mxu0 0
      %1099 = vmatpush2.bf16.msra.mxu0 0
      %1100 = vmatprep.subr.bf16.mxu0 0
      %1101 = vmatpush2.bf16.msra.mxu0 0
      %1102 = vmatprep.mubr.bf16.mxu0 0
      %1103 = vmatmul.mubr.bf16.gmra.mxu0 %v1004
      %v1104 = vpop.f32.mrf.mxu0
      %v1105 = vadd.f32 0.0, %v1104
      %v1106 = vpop.f32.mrf.mxu0
      %v1107 = vpop.f32.mrf.mxu0
      %v1108 = vpop.f32.mrf.mxu0
      %1109 = vdwg.mxu0
      %v1110 = vadd.f32 %v1005, %v1105
      %1111 = vst [vmem:[#allocation11] sm:$0xff] %v1110
      %v1112 = vsub.f32 %v540, %v547
      %v1113 = vadd.f32 %v1112, %v494
      %v1114 = vpack.c.bf16 %v1113, %v1113
      %v1115 = vld [vmem:[#allocation11] sm:$0xff]
      %v1116 = vld [vmem:[#allocation9 + $0x180] sm:$0xf]
      %v1117 = vld [vmem:[#allocation9 + $0x184] sm:$0xf]
      %v1118 = vld [vmem:[#allocation9 + $0x188] sm:$0xf]
      %v1119 = vld [vmem:[#allocation9 + $0x18c] sm:$0xf]
      %v1120 = vld [vmem:[#allocation9 + $0x190] sm:$0xf]
      %v1121 = vld [vmem:[#allocation9 + $0x194] sm:$0xf]
      %v1122 = vld [vmem:[#allocation9 + $0x198] sm:$0xf]
      %v1123 = vld [vmem:[#allocation9 + $0x19c] sm:$0xf]
      %v1124 = vld [vmem:[#allocation9 + $0x1a0] sm:$0xf]
      %v1125 = vld [vmem:[#allocation9 + $0x1a4] sm:$0xf]
      %v1126 = vld [vmem:[#allocation9 + $0x1a8] sm:$0xf]
      %v1127 = vld [vmem:[#allocation9 + $0x1ac] sm:$0xf]
      %v1128 = vld [vmem:[#allocation9 + $0x1b0] sm:$0xf]
      %v1129 = vld [vmem:[#allocation9 + $0x1b4] sm:$0xf]
      %v1130 = vld [vmem:[#allocation9 + $0x1b8] sm:$0xf]
      %v1131 = vld [vmem:[#allocation9 + $0x1bc] sm:$0xf]
      %v1148 = vunpack.c.l.b16 %v1116
      %v1149 = vunpack.c.l.b16 %v1117
      %v1150 = vunpack.c.l.b16 %v1118
      %v1151 = vunpack.c.l.b16 %v1119
      %v1152 = vunpack.c.l.b16 %v1120
      %v1153 = vunpack.c.l.b16 %v1121
      %v1154 = vunpack.c.l.b16 %v1122
      %v1155 = vunpack.c.l.b16 %v1123
      %v1156 = vunpack.c.l.b16 %v1124
      %v1157 = vunpack.c.l.b16 %v1125
      %v1158 = vunpack.c.l.b16 %v1126
      %v1159 = vunpack.c.l.b16 %v1127
      %v1160 = vunpack.c.l.b16 %v1128
      %v1161 = vunpack.c.l.b16 %v1129
      %v1162 = vunpack.c.l.b16 %v1130
      %v1163 = vunpack.c.l.b16 %v1131
      %v1164 = vpack.c.b16 %v1149, %v1148
      %v1165 = vpack.c.b16 %v1151, %v1150
      %v1166 = vpack.c.b16 %v1153, %v1152
      %v1167 = vpack.c.b16 %v1155, %v1154
      %v1168 = vpack.c.b16 %v1157, %v1156
      %v1169 = vpack.c.b16 %v1159, %v1158
      %v1170 = vpack.c.b16 %v1161, %v1160
      %v1171 = vpack.c.b16 %v1163, %v1162
      %1180 = vmatprep.subr.bf16.mxu0 0
      %1181 = vmatpush1.bf16.msra.mxu0 %v1171
      %1182 = vmatprep.subr.bf16.mxu0 0
      %1183 = vmatpush1.bf16.msra.mxu0 %v1170
      %1184 = vmatprep.subr.bf16.mxu0 0
      %1185 = vmatpush1.bf16.msra.mxu0 %v1169
      %1186 = vmatprep.subr.bf16.mxu0 0
      %1187 = vmatpush1.bf16.msra.mxu0 %v1168
      %1188 = vmatprep.subr.bf16.mxu0 0
      %1189 = vmatpush1.bf16.msra.mxu0 %v1167
      %1190 = vmatprep.subr.bf16.mxu0 0
      %1191 = vmatpush1.bf16.msra.mxu0 %v1166
      %1192 = vmatprep.subr.bf16.mxu0 0
      %1193 = vmatpush1.bf16.msra.mxu0 %v1165
      %1194 = vmatprep.subr.bf16.mxu0 0
      %1195 = vmatpush1.bf16.msra.mxu0 %v1164
      %1196 = vmatprep.subr.bf16.mxu0 0
      %1197 = vmatpush2.bf16.msra.mxu0 0
      %1198 = vmatprep.subr.bf16.mxu0 0
      %1199 = vmatpush2.bf16.msra.mxu0 0
      %1200 = vmatprep.subr.bf16.mxu0 0
      %1201 = vmatpush2.bf16.msra.mxu0 0
      %1202 = vmatprep.subr.bf16.mxu0 0
      %1203 = vmatpush2.bf16.msra.mxu0 0
      %1204 = vmatprep.subr.bf16.mxu0 0
      %1205 = vmatpush2.bf16.msra.mxu0 0
      %1206 = vmatprep.subr.bf16.mxu0 0
      %1207 = vmatpush2.bf16.msra.mxu0 0
      %1208 = vmatprep.subr.bf16.mxu0 0
      %1209 = vmatpush2.bf16.msra.mxu0 0
      %1210 = vmatprep.subr.bf16.mxu0 0
      %1211 = vmatpush2.bf16.msra.mxu0 0
      %1212 = vmatprep.mubr.bf16.mxu0 0
      %1213 = vmatmul.mubr.bf16.gmra.mxu0 %v1114
      %v1214 = vpop.f32.mrf.mxu0
      %v1215 = vadd.f32 0.0, %v1214
      %v1216 = vpop.f32.mrf.mxu0
      %v1217 = vpop.f32.mrf.mxu0
      %v1218 = vpop.f32.mrf.mxu0
      %1219 = vdwg.mxu0
      %v1220 = vadd.f32 %v1115, %v1215
      %1221 = vst [vmem:[#allocation11] sm:$0xff] %v1220
      %v1222 = vsub.f32 %v547, %v554
      %v1223 = vadd.f32 %v1222, %v496
      %v1224 = vpack.c.bf16 %v1223, %v1223
      %v1225 = vld [vmem:[#allocation11] sm:$0xff]
      %v1226 = vld [vmem:[#allocation9 + $0x1c0] sm:$0xf]
      %v1227 = vld [vmem:[#allocation9 + $0x1c4] sm:$0xf]
      %v1228 = vld [vmem:[#allocation9 + $0x1c8] sm:$0xf]
      %v1229 = vld [vmem:[#allocation9 + $0x1cc] sm:$0xf]
      %v1230 = vld [vmem:[#allocation9 + $0x1d0] sm:$0xf]
      %v1231 = vld [vmem:[#allocation9 + $0x1d4] sm:$0xf]
      %v1232 = vld [vmem:[#allocation9 + $0x1d8] sm:$0xf]
      %v1233 = vld [vmem:[#allocation9 + $0x1dc] sm:$0xf]
      %v1234 = vld [vmem:[#allocation9 + $0x1e0] sm:$0xf]
      %v1235 = vld [vmem:[#allocation9 + $0x1e4] sm:$0xf]
      %v1236 = vld [vmem:[#allocation9 + $0x1e8] sm:$0xf]
      %v1237 = vld [vmem:[#allocation9 + $0x1ec] sm:$0xf]
      %v1238 = vld [vmem:[#allocation9 + $0x1f0] sm:$0xf]
      %v1239 = vld [vmem:[#allocation9 + $0x1f4] sm:$0xf]
      %v1240 = vld [vmem:[#allocation9 + $0x1f8] sm:$0xf]
      %v1241 = vld [vmem:[#allocation9 + $0x1fc] sm:$0xf]
      %v1258 = vunpack.c.l.b16 %v1226
      %v1259 = vunpack.c.l.b16 %v1227
      %v1260 = vunpack.c.l.b16 %v1228
      %v1261 = vunpack.c.l.b16 %v1229
      %v1262 = vunpack.c.l.b16 %v1230
      %v1263 = vunpack.c.l.b16 %v1231
      %v1264 = vunpack.c.l.b16 %v1232
      %v1265 = vunpack.c.l.b16 %v1233
      %v1266 = vunpack.c.l.b16 %v1234
      %v1267 = vunpack.c.l.b16 %v1235
      %v1268 = vunpack.c.l.b16 %v1236
      %v1269 = vunpack.c.l.b16 %v1237
      %v1270 = vunpack.c.l.b16 %v1238
      %v1271 = vunpack.c.l.b16 %v1239
      %v1272 = vunpack.c.l.b16 %v1240
      %v1273 = vunpack.c.l.b16 %v1241
      %v1274 = vpack.c.b16 %v1259, %v1258
      %v1275 = vpack.c.b16 %v1261, %v1260
      %v1276 = vpack.c.b16 %v1263, %v1262
      %v1277 = vpack.c.b16 %v1265, %v1264
      %v1278 = vpack.c.b16 %v1267, %v1266
      %v1279 = vpack.c.b16 %v1269, %v1268
      %v1280 = vpack.c.b16 %v1271, %v1270
      %v1281 = vpack.c.b16 %v1273, %v1272
      %1290 = vmatprep.subr.bf16.mxu0 0
      %1291 = vmatpush1.bf16.msra.mxu0 %v1281
      %1292 = vmatprep.subr.bf16.mxu0 0
      %1293 = vmatpush1.bf16.msra.mxu0 %v1280
      %1294 = vmatprep.subr.bf16.mxu0 0
      %1295 = vmatpush1.bf16.msra.mxu0 %v1279
      %1296 = vmatprep.subr.bf16.mxu0 0
      %1297 = vmatpush1.bf16.msra.mxu0 %v1278
      %1298 = vmatprep.subr.bf16.mxu0 0
      %1299 = vmatpush1.bf16.msra.mxu0 %v1277
      %1300 = vmatprep.subr.bf16.mxu0 0
      %1301 = vmatpush1.bf16.msra.mxu0 %v1276
      %1302 = vmatprep.subr.bf16.mxu0 0
      %1303 = vmatpush1.bf16.msra.mxu0 %v1275
      %1304 = vmatprep.subr.bf16.mxu0 0
      %1305 = vmatpush1.bf16.msra.mxu0 %v1274
      %1306 = vmatprep.subr.bf16.mxu0 0
      %1307 = vmatpush2.bf16.msra.mxu0 0
      %1308 = vmatprep.subr.bf16.mxu0 0
      %1309 = vmatpush2.bf16.msra.mxu0 0
      %1310 = vmatprep.subr.bf16.mxu0 0
      %1311 = vmatpush2.bf16.msra.mxu0 0
      %1312 = vmatprep.subr.bf16.mxu0 0
      %1313 = vmatpush2.bf16.msra.mxu0 0
      %1314 = vmatprep.subr.bf16.mxu0 0
      %1315 = vmatpush2.bf16.msra.mxu0 0
      %1316 = vmatprep.subr.bf16.mxu0 0
      %1317 = vmatpush2.bf16.msra.mxu0 0
      %1318 = vmatprep.subr.bf16.mxu0 0
      %1319 = vmatpush2.bf16.msra.mxu0 0
      %1320 = vmatprep.subr.bf16.mxu0 0
      %1321 = vmatpush2.bf16.msra.mxu0 0
      %1322 = vmatprep.mubr.bf16.mxu0 0
      %1323 = vmatmul.mubr.bf16.gmra.mxu0 %v1224
      %v1324 = vpop.f32.mrf.mxu0
      %v1325 = vadd.f32 0.0, %v1324
      %v1326 = vpop.f32.mrf.mxu0
      %v1327 = vpop.f32.mrf.mxu0
      %v1328 = vpop.f32.mrf.mxu0
      %1329 = vdwg.mxu0
      %v1330 = vadd.f32 %v1225, %v1325
      %1331 = vst [vmem:[#allocation11] sm:$0xff] %v1330
      %v1332 = vsub.f32 %v554, %v561
      %v1333 = vadd.f32 %v1332, %v498
      %v1334 = vpack.c.bf16 %v1333, %v1333
      %v1335 = vld [vmem:[#allocation11] sm:$0xff]
      %v1336 = vld [vmem:[#allocation9 + $0x200] sm:$0xf]
      %v1337 = vld [vmem:[#allocation9 + $0x204] sm:$0xf]
      %v1338 = vld [vmem:[#allocation9 + $0x208] sm:$0xf]
      %v1339 = vld [vmem:[#allocation9 + $0x20c] sm:$0xf]
      %v1340 = vld [vmem:[#allocation9 + $0x210] sm:$0xf]
      %v1341 = vld [vmem:[#allocation9 + $0x214] sm:$0xf]
      %v1342 = vld [vmem:[#allocation9 + $0x218] sm:$0xf]
      %v1343 = vld [vmem:[#allocation9 + $0x21c] sm:$0xf]
      %v1344 = vld [vmem:[#allocation9 + $0x220] sm:$0xf]
      %v1345 = vld [vmem:[#allocation9 + $0x224] sm:$0xf]
      %v1346 = vld [vmem:[#allocation9 + $0x228] sm:$0xf]
      %v1347 = vld [vmem:[#allocation9 + $0x22c] sm:$0xf]
      %v1348 = vld [vmem:[#allocation9 + $0x230] sm:$0xf]
      %v1349 = vld [vmem:[#allocation9 + $0x234] sm:$0xf]
      %v1350 = vld [vmem:[#allocation9 + $0x238] sm:$0xf]
      %v1351 = vld [vmem:[#allocation9 + $0x23c] sm:$0xf]
      %v1368 = vunpack.c.l.b16 %v1336
      %v1369 = vunpack.c.l.b16 %v1337
      %v1370 = vunpack.c.l.b16 %v1338
      %v1371 = vunpack.c.l.b16 %v1339
      %v1372 = vunpack.c.l.b16 %v1340
      %v1373 = vunpack.c.l.b16 %v1341
      %v1374 = vunpack.c.l.b16 %v1342
      %v1375 = vunpack.c.l.b16 %v1343
      %v1376 = vunpack.c.l.b16 %v1344
      %v1377 = vunpack.c.l.b16 %v1345
      %v1378 = vunpack.c.l.b16 %v1346
      %v1379 = vunpack.c.l.b16 %v1347
      %v1380 = vunpack.c.l.b16 %v1348
      %v1381 = vunpack.c.l.b16 %v1349
      %v1382 = vunpack.c.l.b16 %v1350
      %v1383 = vunpack.c.l.b16 %v1351
      %v1384 = vpack.c.b16 %v1369, %v1368
      %v1385 = vpack.c.b16 %v1371, %v1370
      %v1386 = vpack.c.b16 %v1373, %v1372
      %v1387 = vpack.c.b16 %v1375, %v1374
      %v1388 = vpack.c.b16 %v1377, %v1376
      %v1389 = vpack.c.b16 %v1379, %v1378
      %v1390 = vpack.c.b16 %v1381, %v1380
      %v1391 = vpack.c.b16 %v1383, %v1382
      %1400 = vmatprep.subr.bf16.mxu0 0
      %1401 = vmatpush1.bf16.msra.mxu0 %v1391
      %1402 = vmatprep.subr.bf16.mxu0 0
      %1403 = vmatpush1.bf16.msra.mxu0 %v1390
      %1404 = vmatprep.subr.bf16.mxu0 0
      %1405 = vmatpush1.bf16.msra.mxu0 %v1389
      %1406 = vmatprep.subr.bf16.mxu0 0
      %1407 = vmatpush1.bf16.msra.mxu0 %v1388
      %1408 = vmatprep.subr.bf16.mxu0 0
      %1409 = vmatpush1.bf16.msra.mxu0 %v1387
      %1410 = vmatprep.subr.bf16.mxu0 0
      %1411 = vmatpush1.bf16.msra.mxu0 %v1386
      %1412 = vmatprep.subr.bf16.mxu0 0
      %1413 = vmatpush1.bf16.msra.mxu0 %v1385
      %1414 = vmatprep.subr.bf16.mxu0 0
      %1415 = vmatpush1.bf16.msra.mxu0 %v1384
      %1416 = vmatprep.subr.bf16.mxu0 0
      %1417 = vmatpush2.bf16.msra.mxu0 0
      %1418 = vmatprep.subr.bf16.mxu0 0
      %1419 = vmatpush2.bf16.msra.mxu0 0
      %1420 = vmatprep.subr.bf16.mxu0 0
      %1421 = vmatpush2.bf16.msra.mxu0 0
      %1422 = vmatprep.subr.bf16.mxu0 0
      %1423 = vmatpush2.bf16.msra.mxu0 0
      %1424 = vmatprep.subr.bf16.mxu0 0
      %1425 = vmatpush2.bf16.msra.mxu0 0
      %1426 = vmatprep.subr.bf16.mxu0 0
      %1427 = vmatpush2.bf16.msra.mxu0 0
      %1428 = vmatprep.subr.bf16.mxu0 0
      %1429 = vmatpush2.bf16.msra.mxu0 0
      %1430 = vmatprep.subr.bf16.mxu0 0
      %1431 = vmatpush2.bf16.msra.mxu0 0
      %1432 = vmatprep.mubr.bf16.mxu0 0
      %1433 = vmatmul.mubr.bf16.gmra.mxu0 %v1334
      %v1434 = vpop.f32.mrf.mxu0
      %v1435 = vadd.f32 0.0, %v1434
      %v1436 = vpop.f32.mrf.mxu0
      %v1437 = vpop.f32.mrf.mxu0
      %v1438 = vpop.f32.mrf.mxu0
      %1439 = vdwg.mxu0
      %v1440 = vadd.f32 %v1335, %v1435
      %1441 = vst [vmem:[#allocation11] sm:$0xff] %v1440
    $region41: #{tpu_custom_call.1} parent=1 // pred_fallthru
      _
    // Predicated region
    $region42: #{tpu_custom_call.1} parent=1 // pred_check
      _
    $region43: #{tpu_custom_call.1} parent=1 // pred_check_branch
      %1443 = sbr.rel (0) target = $region45
    $region44: #{tpu_custom_call.1} parent=1 // pred_region
      %s1445 = ssub.s32 128, 128
      %1446 = vsyncadd [#allocation5], %s1445
      %s1448 = sshll.u32 [#allocation11], 4
      %s1449 = int_to_ptr.vmem [resolvable:$true] %s1448
      %1451 = dma.vmem_to_hbm [thread:$0]  %s1449, 128, %s4, [#allocation5]
    $region45: #{tpu_custom_call.1} parent=1 // pred_fallthru
      _
    // Predicated region
    $region46: #{tpu_custom_call.1} parent=1 // pred_check
      _
    $region47: #{tpu_custom_call.1} parent=1 // pred_check_branch
      %1453 = sbr.rel (0) target = $region49
    $region48: #{tpu_custom_call.1} parent=1 // pred_region
      %1454 = dma.done [#allocation5], 128
    $region49: #{tpu_custom_call.1} parent=1 // pred_fallthru
      _
    %1455 = vsyncpa [#allocation4], 1
    %1456 = vsyncpa [#allocation7], 1
    %1457 = vsyncpa [#allocation10], 1
    %1458 = vsyncpa [#allocation5], 1

</llo_original>
